<compile_context>
chip_gen: v5e
topology: v5e:2x2
jax: 0.10.0
libtpu: 0.0.40
codegen_flags: <defaults>
</compile_context>

<pallas_src>
import jax
import jax.numpy as jnp
import numpy as np
from jax import lax
from jax.experimental import pallas as pl
from jax.experimental.pallas import tpu as pltpu

# Small, module-consistent shapes.
B, N, DIM = 2, 8, 32
HEADS, DIM_HEAD = 4, 16
INNER = HEADS * DIM_HEAD          # 64
ROWS = B * N                      # 16  (all batch elements folded into one step)
COLS = HEADS * ROWS               # 64  (stacked per-head attention columns)
SCALE = DIM_HEAD ** -0.5
LN_EPS = 1e-5
NEG_BIG = -1e30
HI = lax.Precision.HIGHEST


def attention_kernel(x_ref, wqkv_ref, bd_ref, vm_ref, bcast_ref, bsum_ref,
                     reattn_ref, avg_ref, gamma_ref, beta_ref,
                     wout_ref, bout_ref, o_ref):
    f32 = jnp.float32

    x = x_ref[...]                                                   # (ROWS, DIM)
    bd = bd_ref[...]                                                 # (COLS, INNER) 0/1
    vm = vm_ref[...]                                                 # (ROWS, COLS) 0/1

    # ---- QKV projection: one MXU op -----------------------------------------
    qkv = jnp.dot(x, wqkv_ref[...], preferred_element_type=f32, precision=HI)
    q = qkv[:, :INNER]
    k = qkv[:, INNER:2 * INNER]
    v = qkv[:, 2 * INNER:]

    # ---- block-diagonal K and V: same orientation, shared mask, no transpose --
    kblock = jnp.concatenate([k] * HEADS, axis=0) * bd               # (COLS, INNER)
    vblock = jnp.concatenate([v] * HEADS, axis=0) * bd               # (COLS, INNER)

    # ---- fused per-head QK^T: NT matmul (contract the last dims) --------------
    s = lax.dot_general(q, kblock, (((1,), (1,)), ((), ())),
                        preferred_element_type=f32, precision=HI) * SCALE
    s = jnp.where(vm > 0.5, s, NEG_BIG)                              # mask cross-batch

    # ---- full-width softmax over each head block -------------------------------
    m_heads = jnp.concatenate(
        [jnp.max(s[:, h * ROWS:(h + 1) * ROWS], axis=-1, keepdims=True)
         for h in range(HEADS)], axis=1)                             # (ROWS, HEADS)
    m_full = jnp.dot(m_heads, bcast_ref[...],
                     preferred_element_type=f32, precision=HI)       # (ROWS, COLS)
    e = jnp.exp(s - m_full)                                          # masked cols -> 0
    denom = jnp.dot(e, bsum_ref[...],
                    preferred_element_type=f32, precision=HI)        # per-head row sums
    attn = e * pl.reciprocal(denom)                                  # exact recip (EUP)

    # ---- re-attention head mixing: one MXU op with kron(W_re, I_ROWS) ----------
    mixed = jnp.dot(attn, reattn_ref[...], preferred_element_type=f32, precision=HI)

    # ---- LayerNorm over the head axis, full width ------------------------------
    mean = jnp.dot(mixed, avg_ref[...], preferred_element_type=f32, precision=HI)
    cent = mixed - mean
    var = jnp.dot(cent * cent, avg_ref[...], preferred_element_type=f32, precision=HI)
    inv = lax.rsqrt(var + LN_EPS)
    normed = (cent * inv * gamma_ref[...] + beta_ref[...]) * vm      # re-mask cross-batch

    # ---- fused attn @ V and output projection ----------------------------------
    head_out = jnp.dot(normed, vblock, preferred_element_type=f32, precision=HI)
    out = jnp.dot(head_out, wout_ref[...],
                  preferred_element_type=f32, precision=HI) + bout_ref[...]
    o_ref[...] = out.astype(o_ref.dtype)


def prepare_constants(wre, gamma, beta):
    """One-time host-side prep of all static kernel operands (hoisted off the hot
    path; nothing here is re-materialized by XLA per forward call)."""
    f32 = np.float32
    eye_h = np.eye(HEADS, dtype=f32)
    # block-diagonal head mask for the stacked K / V operands
    bd_mask = np.kron(eye_h, np.ones((ROWS, DIM_HEAD), f32))          # (COLS, INNER)
    # batch-validity mask, already tiled to full softmax width
    base = np.kron(np.eye(B, dtype=f32), np.ones((N, N), f32))        # (ROWS, ROWS)
    vmask = np.tile(base, (1, HEADS))                                 # (ROWS, COLS)
    # per-head max broadcast / per-head block-sum indicator matrices
    bcast = np.kron(eye_h, np.ones((1, ROWS), f32))                   # (HEADS, COLS)
    bsum = np.kron(eye_h, np.ones((ROWS, ROWS), f32))                 # (COLS, COLS)
    # re-attention head mixing as a single matmul operand
    reattn = np.kron(np.asarray(wre, f32), np.eye(ROWS, dtype=f32))   # (COLS, COLS)
    # head-axis block-averaging matrix (mean and biased variance)
    avg = np.kron(np.ones((HEADS, HEADS), f32) / HEADS,
                  np.eye(ROWS, dtype=f32))                            # (COLS, COLS)
    # LayerNorm affine params as lane vectors (value repeated per head block)
    gamma_row = np.kron(np.asarray(gamma, f32), np.ones((ROWS,), f32))[None, :]
    beta_row = np.kron(np.asarray(beta, f32), np.ones((ROWS,), f32))[None, :]
    return tuple(jnp.asarray(c) for c in
                 (bd_mask, vmask, bcast, bsum, reattn, avg, gamma_row, beta_row))


def attention_forward(x, wqkv, wout, bout, consts):
    x2d = x.reshape(ROWS, DIM)
    shapes = [(ROWS, DIM), (DIM, 3 * INNER), (COLS, INNER), (ROWS, COLS),
              (HEADS, COLS), (COLS, COLS), (COLS, COLS), (COLS, COLS),
              (1, COLS), (1, COLS), (INNER, DIM), (1, DIM)]
    out2d = pl.pallas_call(
        attention_kernel,
        out_shape=jax.ShapeDtypeStruct((ROWS, DIM), x.dtype),
        grid_spec=pltpu.PrefetchScalarGridSpec(
            num_scalar_prefetch=0,
            grid=(1,),                               # batch fully folded: one step
            in_specs=[pl.BlockSpec(s, lambda i: (0, 0)) for s in shapes],
            out_specs=pl.BlockSpec((ROWS, DIM), lambda i: (0, 0)),
        ),
        compiler_params=pltpu.CompilerParams(dimension_semantics=("arbitrary",)),
    )(x2d, wqkv, *consts, wout, bout)
    return out2d.reshape(B, N, DIM)


def reference(x, wqkv, wre, gamma, beta, wout, bout):
    """Pure-JAX reference mirroring the torch forward (f32 / HIGHEST precision)."""
    qkv = jnp.dot(x, wqkv, precision=HI)
    q, k, v = jnp.split(qkv, 3, axis=-1)
    split = lambda t: t.reshape(B, N, HEADS, DIM_HEAD).transpose(0, 2, 1, 3)
    q, k, v = map(split, (q, k, v))
    dots = jnp.einsum('bhid,bhjd->bhij', q, k, precision=HI) * SCALE
    attn = jax.nn.softmax(dots, axis=-1)
    attn = jnp.einsum('bhij,hg->bgij', attn, wre, precision=HI)
    a = attn.transpose(0, 2, 3, 1)                     # b i j h
    mean = a.mean(-1, keepdims=True)
    var = ((a - mean) ** 2).mean(-1, keepdims=True)
    a = (a - mean) / jnp.sqrt(var + LN_EPS) * gamma + beta
    attn = a.transpose(0, 3, 1, 2)
    out = jnp.einsum('bhij,bhjd->bhid', attn, v, precision=HI)
    out = out.transpose(0, 2, 1, 3).reshape(B, N, INNER)
    return jnp.dot(out, wout, precision=HI) + bout.reshape(DIM)


if __name__ == "__main__":
    key = jax.random.PRNGKey(0)
    kx, k1, k2, k3, k4, k5, k6 = jax.random.split(key, 7)

    x = jax.random.normal(kx, (B, N, DIM), jnp.float32)
    # deterministic parameter init (module __init__ shapes; synthetic values)
    wqkv = jax.random.normal(k1, (DIM, 3 * INNER), jnp.float32) * (DIM ** -0.5)
    wre = jax.random.normal(k2, (HEADS, HEADS), jnp.float32)           # reattn_weights
    gamma = 1.0 + 0.1 * jax.random.normal(k3, (HEADS,), jnp.float32)   # LayerNorm weight
    beta = 0.1 * jax.random.normal(k4, (HEADS,), jnp.float32)          # LayerNorm bias
    wout = jax.random.normal(k5, (INNER, DIM), jnp.float32) * (INNER ** -0.5)
    bout = 0.1 * jax.random.normal(k6, (1, DIM), jnp.float32)

    consts = prepare_constants(wre, gamma, beta)       # one-time static-operand prep

    out = attention_forward(x, wqkv, wout, bout, consts)
    out = jax.block_until_ready(out)

    ref = reference(x, wqkv, wre, gamma, beta, wout, bout)
    # All matmuls run at f32 / HIGHEST precision on both sides; tolerance absorbs
    # exp/rsqrt implementation deltas between Mosaic and XLA, which the head-axis
    # LayerNorm can amplify.
    np.testing.assert_allclose(np.asarray(out), np.asarray(ref), rtol=2e-3, atol=5e-3)
    print("KERNEL_OK")
</pallas_src>

<mosaic_0001>
module attributes {stable_mosaic.version = 11 : i64} {
  func.func @attention_kernel(%arg0: i32, %arg1: memref<16x32xf32, #tpu.memory_space<vmem>>, %arg2: memref<32x192xf32, #tpu.memory_space<vmem>>, %arg3: memref<64x64xf32, #tpu.memory_space<vmem>>, %arg4: memref<16x64xf32, #tpu.memory_space<vmem>>, %arg5: memref<4x64xf32, #tpu.memory_space<vmem>>, %arg6: memref<64x64xf32, #tpu.memory_space<vmem>>, %arg7: memref<64x64xf32, #tpu.memory_space<vmem>>, %arg8: memref<64x64xf32, #tpu.memory_space<vmem>>, %arg9: memref<1x64xf32, #tpu.memory_space<vmem>>, %arg10: memref<1x64xf32, #tpu.memory_space<vmem>>, %arg11: memref<64x32xf32, #tpu.memory_space<vmem>>, %arg12: memref<1x32xf32, #tpu.memory_space<vmem>>, %arg13: memref<16x32xf32, #tpu.memory_space<vmem>>) attributes {dimension_semantics = [#tpu.dimension_semantics<arbitrary>], iteration_bounds = array<i64: 1>, scalar_prefetch = 0 : i64, scratch_operands = 0 : i64, tpu.core_type = #tpu.core_type<tc>, window_params = [{pipeline_mode = #tpu.pipeline_mode<synchronous>, transform_indices = @transform_0, window_bounds = array<i64: 16, 32>}, {pipeline_mode = #tpu.pipeline_mode<synchronous>, transform_indices = @transform_1, window_bounds = array<i64: 32, 192>}, {pipeline_mode = #tpu.pipeline_mode<synchronous>, transform_indices = @transform_2, window_bounds = array<i64: 64, 64>}, {pipeline_mode = #tpu.pipeline_mode<synchronous>, transform_indices = @transform_3, window_bounds = array<i64: 16, 64>}, {pipeline_mode = #tpu.pipeline_mode<synchronous>, transform_indices = @transform_4, window_bounds = array<i64: 4, 64>}, {pipeline_mode = #tpu.pipeline_mode<synchronous>, transform_indices = @transform_5, window_bounds = array<i64: 64, 64>}, {pipeline_mode = #tpu.pipeline_mode<synchronous>, transform_indices = @transform_6, window_bounds = array<i64: 64, 64>}, {pipeline_mode = #tpu.pipeline_mode<synchronous>, transform_indices = @transform_7, window_bounds = array<i64: 64, 64>}, {pipeline_mode = #tpu.pipeline_mode<synchronous>, transform_indices = @transform_8, window_bounds = array<i64: 1, 64>}, {pipeline_mode = #tpu.pipeline_mode<synchronous>, transform_indices = @transform_9, window_bounds = array<i64: 1, 64>}, {pipeline_mode = #tpu.pipeline_mode<synchronous>, transform_indices = @transform_10, window_bounds = array<i64: 64, 32>}, {pipeline_mode = #tpu.pipeline_mode<synchronous>, transform_indices = @transform_11, window_bounds = array<i64: 1, 32>}, {pipeline_mode = #tpu.pipeline_mode<synchronous>, transform_indices = @transform_12, window_bounds = array<i64: 16, 32>}]} {
    %c0 = arith.constant 0 : index
    %c0_0 = arith.constant 0 : index
    %0 = vector.load %arg1[%c0, %c0_0] : memref<16x32xf32, #tpu.memory_space<vmem>>, vector<16x32xf32>
    %c0_1 = arith.constant 0 : index
    %c0_2 = arith.constant 0 : index
    %1 = vector.load %arg3[%c0_1, %c0_2] : memref<64x64xf32, #tpu.memory_space<vmem>>, vector<64x64xf32>
    %c0_3 = arith.constant 0 : index
    %c0_4 = arith.constant 0 : index
    %2 = vector.load %arg4[%c0_3, %c0_4] : memref<16x64xf32, #tpu.memory_space<vmem>>, vector<16x64xf32>
    %c0_5 = arith.constant 0 : index
    %c0_6 = arith.constant 0 : index
    %3 = vector.load %arg2[%c0_5, %c0_6] : memref<32x192xf32, #tpu.memory_space<vmem>>, vector<32x192xf32>
    %cst = arith.constant dense<0.000000e+00> : vector<16x192xf32>
    %4 = tpu.matmul %0, %3, %cst {dimension_numbers = #tpu.dot_dimension_numbers<[1], [0], [0], [1], [0, 0, 1, 1], [], []>, precision = #tpu.contract_precision<fp32>} : vector<16x32xf32>, vector<32x192xf32>, vector<16x192xf32> -> vector<16x192xf32>
    %5 = vector.extract_strided_slice %4 {offsets = [0, 0], sizes = [16, 64], strides = [1, 1]} : vector<16x192xf32> to vector<16x64xf32>
    %6 = vector.extract_strided_slice %4 {offsets = [0, 64], sizes = [16, 64], strides = [1, 1]} : vector<16x192xf32> to vector<16x64xf32>
    %7 = vector.extract_strided_slice %4 {offsets = [0, 128], sizes = [16, 64], strides = [1, 1]} : vector<16x192xf32> to vector<16x64xf32>
    %8 = tpu.concatenate %6, %6, %6, %6 in 0 : vector<16x64xf32>, vector<16x64xf32>, vector<16x64xf32>, vector<16x64xf32> -> vector<64x64xf32>
    %9 = arith.mulf %8, %1 : vector<64x64xf32>
    %10 = tpu.concatenate %7, %7, %7, %7 in 0 : vector<16x64xf32>, vector<16x64xf32>, vector<16x64xf32>, vector<16x64xf32> -> vector<64x64xf32>
    %11 = arith.mulf %10, %1 : vector<64x64xf32>
    %cst_7 = arith.constant dense<0.000000e+00> : vector<16x64xf32>
    %12 = tpu.matmul %5, %9, %cst_7 {dimension_numbers = #tpu.dot_dimension_numbers<[1], [1], [0], [0], [0, 0, 1, 0], [], []>, precision = #tpu.contract_precision<fp32>} : vector<16x64xf32>, vector<64x64xf32>, vector<16x64xf32> -> vector<16x64xf32>
    %cst_8 = arith.constant 2.500000e-01 : f32
    %13 = vector.broadcast %cst_8 : f32 to vector<16x64xf32>
    %14 = arith.mulf %12, %13 : vector<16x64xf32>
    %cst_9 = arith.constant 5.000000e-01 : f32
    %15 = vector.broadcast %cst_9 : f32 to vector<16x64xf32>
    %16 = arith.cmpf ogt, %2, %15 : vector<16x64xf32>
    %cst_10 = arith.constant -1.000000e+30 : f32
    %17 = vector.broadcast %cst_10 : f32 to vector<16x64xf32>
    %18 = arith.select %16, %14, %17 : vector<16x64xi1>, vector<16x64xf32>
    %19 = vector.extract_strided_slice %18 {offsets = [0, 0], sizes = [16, 16], strides = [1, 1]} : vector<16x64xf32> to vector<16x16xf32>
    %cst_11 = arith.constant dense<0xFF800000> : vector<16xf32>
    %20 = vector.multi_reduction <maximumf>, %19, %cst_11 [1] : vector<16x16xf32> to vector<16xf32>
    %21 = vector.shape_cast %20 : vector<16xf32> to vector<16x1xf32>
    %22 = vector.extract_strided_slice %18 {offsets = [0, 16], sizes = [16, 16], strides = [1, 1]} : vector<16x64xf32> to vector<16x16xf32>
    %cst_12 = arith.constant dense<0xFF800000> : vector<16xf32>
    %23 = vector.multi_reduction <maximumf>, %22, %cst_12 [1] : vector<16x16xf32> to vector<16xf32>
    %24 = vector.shape_cast %23 : vector<16xf32> to vector<16x1xf32>
    %25 = vector.extract_strided_slice %18 {offsets = [0, 32], sizes = [16, 16], strides = [1, 1]} : vector<16x64xf32> to vector<16x16xf32>
    %cst_13 = arith.constant dense<0xFF800000> : vector<16xf32>
    %26 = vector.multi_reduction <maximumf>, %25, %cst_13 [1] : vector<16x16xf32> to vector<16xf32>
    %27 = vector.shape_cast %26 : vector<16xf32> to vector<16x1xf32>
    %28 = vector.extract_strided_slice %18 {offsets = [0, 48], sizes = [16, 16], strides = [1, 1]} : vector<16x64xf32> to vector<16x16xf32>
    %cst_14 = arith.constant dense<0xFF800000> : vector<16xf32>
    %29 = vector.multi_reduction <maximumf>, %28, %cst_14 [1] : vector<16x16xf32> to vector<16xf32>
    %30 = vector.shape_cast %29 : vector<16xf32> to vector<16x1xf32>
    %31 = tpu.concatenate %21, %24, %27, %30 in 1 : vector<16x1xf32>, vector<16x1xf32>, vector<16x1xf32>, vector<16x1xf32> -> vector<16x4xf32>
    %c0_15 = arith.constant 0 : index
    %c0_16 = arith.constant 0 : index
    %32 = vector.load %arg5[%c0_15, %c0_16] : memref<4x64xf32, #tpu.memory_space<vmem>>, vector<4x64xf32>
    %cst_17 = arith.constant dense<0.000000e+00> : vector<16x64xf32>
    %33 = tpu.matmul %31, %32, %cst_17 {dimension_numbers = #tpu.dot_dimension_numbers<[1], [0], [0], [1], [0, 0, 1, 1], [], []>, precision = #tpu.contract_precision<fp32>} : vector<16x4xf32>, vector<4x64xf32>, vector<16x64xf32> -> vector<16x64xf32>
    %34 = arith.subf %18, %33 : vector<16x64xf32>
    %35 = math.exp %34 : vector<16x64xf32>
    %c0_18 = arith.constant 0 : index
    %c0_19 = arith.constant 0 : index
    %36 = vector.load %arg6[%c0_18, %c0_19] : memref<64x64xf32, #tpu.memory_space<vmem>>, vector<64x64xf32>
    %cst_20 = arith.constant dense<0.000000e+00> : vector<16x64xf32>
    %37 = tpu.matmul %35, %36, %cst_20 {dimension_numbers = #tpu.dot_dimension_numbers<[1], [0], [0], [1], [0, 0, 1, 1], [], []>, precision = #tpu.contract_precision<fp32>} : vector<16x64xf32>, vector<64x64xf32>, vector<16x64xf32> -> vector<16x64xf32>
    %38 = tpu.reciprocal %37 : vector<16x64xf32> -> vector<16x64xf32>
    %39 = arith.mulf %35, %38 : vector<16x64xf32>
    %c0_21 = arith.constant 0 : index
    %c0_22 = arith.constant 0 : index
    %40 = vector.load %arg7[%c0_21, %c0_22] : memref<64x64xf32, #tpu.memory_space<vmem>>, vector<64x64xf32>
    %cst_23 = arith.constant dense<0.000000e+00> : vector<16x64xf32>
    %41 = tpu.matmul %39, %40, %cst_23 {dimension_numbers = #tpu.dot_dimension_numbers<[1], [0], [0], [1], [0, 0, 1, 1], [], []>, precision = #tpu.contract_precision<fp32>} : vector<16x64xf32>, vector<64x64xf32>, vector<16x64xf32> -> vector<16x64xf32>
    %c0_24 = arith.constant 0 : index
    %c0_25 = arith.constant 0 : index
    %42 = vector.load %arg8[%c0_24, %c0_25] : memref<64x64xf32, #tpu.memory_space<vmem>>, vector<64x64xf32>
    %cst_26 = arith.constant dense<0.000000e+00> : vector<16x64xf32>
    %43 = tpu.matmul %41, %42, %cst_26 {dimension_numbers = #tpu.dot_dimension_numbers<[1], [0], [0], [1], [0, 0, 1, 1], [], []>, precision = #tpu.contract_precision<fp32>} : vector<16x64xf32>, vector<64x64xf32>, vector<16x64xf32> -> vector<16x64xf32>
    %44 = arith.subf %41, %43 : vector<16x64xf32>
    %45 = arith.mulf %44, %44 : vector<16x64xf32>
    %c0_27 = arith.constant 0 : index
    %c0_28 = arith.constant 0 : index
    %46 = vector.load %arg8[%c0_27, %c0_28] : memref<64x64xf32, #tpu.memory_space<vmem>>, vector<64x64xf32>
    %cst_29 = arith.constant dense<0.000000e+00> : vector<16x64xf32>
    %47 = tpu.matmul %45, %46, %cst_29 {dimension_numbers = #tpu.dot_dimension_numbers<[1], [0], [0], [1], [0, 0, 1, 1], [], []>, precision = #tpu.contract_precision<fp32>} : vector<16x64xf32>, vector<64x64xf32>, vector<16x64xf32> -> vector<16x64xf32>
    %cst_30 = arith.constant 9.99999974E-6 : f32
    %48 = vector.broadcast %cst_30 : f32 to vector<16x64xf32>
    %49 = arith.addf %47, %48 : vector<16x64xf32>
    %50 = math.rsqrt %49 : vector<16x64xf32>
    %51 = arith.mulf %44, %50 : vector<16x64xf32>
    %c0_31 = arith.constant 0 : index
    %c0_32 = arith.constant 0 : index
    %52 = vector.load %arg9[%c0_31, %c0_32] : memref<1x64xf32, #tpu.memory_space<vmem>>, vector<1x64xf32>
    %53 = vector.broadcast %52 : vector<1x64xf32> to vector<16x64xf32>
    %54 = arith.mulf %51, %53 : vector<16x64xf32>
    %c0_33 = arith.constant 0 : index
    %c0_34 = arith.constant 0 : index
    %55 = vector.load %arg10[%c0_33, %c0_34] : memref<1x64xf32, #tpu.memory_space<vmem>>, vector<1x64xf32>
    %56 = vector.broadcast %55 : vector<1x64xf32> to vector<16x64xf32>
    %57 = arith.addf %54, %56 : vector<16x64xf32>
    %58 = arith.mulf %57, %2 : vector<16x64xf32>
    %cst_35 = arith.constant dense<0.000000e+00> : vector<16x64xf32>
    %59 = tpu.matmul %58, %11, %cst_35 {dimension_numbers = #tpu.dot_dimension_numbers<[1], [0], [0], [1], [0, 0, 1, 1], [], []>, precision = #tpu.contract_precision<fp32>} : vector<16x64xf32>, vector<64x64xf32>, vector<16x64xf32> -> vector<16x64xf32>
    %c0_36 = arith.constant 0 : index
    %c0_37 = arith.constant 0 : index
    %60 = vector.load %arg11[%c0_36, %c0_37] : memref<64x32xf32, #tpu.memory_space<vmem>>, vector<64x32xf32>
    %cst_38 = arith.constant dense<0.000000e+00> : vector<16x32xf32>
    %61 = tpu.matmul %59, %60, %cst_38 {dimension_numbers = #tpu.dot_dimension_numbers<[1], [0], [0], [1], [0, 0, 1, 1], [], []>, precision = #tpu.contract_precision<fp32>} : vector<16x64xf32>, vector<64x32xf32>, vector<16x32xf32> -> vector<16x32xf32>
    %c0_39 = arith.constant 0 : index
    %c0_40 = arith.constant 0 : index
    %62 = vector.load %arg12[%c0_39, %c0_40] : memref<1x32xf32, #tpu.memory_space<vmem>>, vector<1x32xf32>
    %63 = vector.broadcast %62 : vector<1x32xf32> to vector<16x32xf32>
    %64 = arith.addf %61, %63 : vector<16x32xf32>
    %c0_41 = arith.constant 0 : index
    %c0_42 = arith.constant 0 : index
    %65 = vector.load %arg13[%c0_41, %c0_42] : memref<16x32xf32, #tpu.memory_space<vmem>>, vector<16x32xf32>
    tpu.vector_store %arg13[%c0_41, %c0_42], %64 {strides = array<i32>} : memref<16x32xf32, #tpu.memory_space<vmem>>, vector<16x32xf32>,
    return
  }
  func.func @transform_0(%arg0: i32) -> (i32, i32) {
    %c0_i32 = arith.constant 0 : i32
    %c0_i32_0 = arith.constant 0 : i32
    %c0_i32_1 = arith.constant 0 : i32
    return %c0_i32, %c0_i32_0 : i32, i32
  }
  func.func @transform_1(%arg0: i32) -> (i32, i32) {
    %c0_i32 = arith.constant 0 : i32
    %c0_i32_0 = arith.constant 0 : i32
    %c0_i32_1 = arith.constant 0 : i32
    return %c0_i32, %c0_i32_0 : i32, i32
  }
  func.func @transform_2(%arg0: i32) -> (i32, i32) {
    %c0_i32 = arith.constant 0 : i32
    %c0_i32_0 = arith.constant 0 : i32
    %c0_i32_1 = arith.constant 0 : i32
    return %c0_i32, %c0_i32_0 : i32, i32
  }
  func.func @transform_3(%arg0: i32) -> (i32, i32) {
    %c0_i32 = arith.constant 0 : i32
    %c0_i32_0 = arith.constant 0 : i32
    %c0_i32_1 = arith.constant 0 : i32
    return %c0_i32, %c0_i32_0 : i32, i32
  }
  func.func @transform_4(%arg0: i32) -> (i32, i32) {
    %c0_i32 = arith.constant 0 : i32
    %c0_i32_0 = arith.constant 0 : i32
    %c0_i32_1 = arith.constant 0 : i32
    return %c0_i32, %c0_i32_0 : i32, i32
  }
  func.func @transform_5(%arg0: i32) -> (i32, i32) {
    %c0_i32 = arith.constant 0 : i32
    %c0_i32_0 = arith.constant 0 : i32
    %c0_i32_1 = arith.constant 0 : i32
    return %c0_i32, %c0_i32_0 : i32, i32
  }
  func.func @transform_6(%arg0: i32) -> (i32, i32) {
    %c0_i32 = arith.constant 0 : i32
    %c0_i32_0 = arith.constant 0 : i32
    %c0_i32_1 = arith.constant 0 : i32
    return %c0_i32, %c0_i32_0 : i32, i32
  }
  func.func @transform_7(%arg0: i32) -> (i32, i32) {
    %c0_i32 = arith.constant 0 : i32
    %c0_i32_0 = arith.constant 0 : i32
    %c0_i32_1 = arith.constant 0 : i32
    return %c0_i32, %c0_i32_0 : i32, i32
  }
  func.func @transform_8(%arg0: i32) -> (i32, i32) {
    %c0_i32 = arith.constant 0 : i32
    %c0_i32_0 = arith.constant 0 : i32
    %c0_i32_1 = arith.constant 0 : i32
    return %c0_i32, %c0_i32_0 : i32, i32
  }
  func.func @transform_9(%arg0: i32) -> (i32, i32) {
    %c0_i32 = arith.constant 0 : i32
    %c0_i32_0 = arith.constant 0 : i32
    %c0_i32_1 = arith.constant 0 : i32
    return %c0_i32, %c0_i32_0 : i32, i32
  }
  func.func @transform_10(%arg0: i32) -> (i32, i32) {
    %c0_i32 = arith.constant 0 : i32
    %c0_i32_0 = arith.constant 0 : i32
    %c0_i32_1 = arith.constant 0 : i32
    return %c0_i32, %c0_i32_0 : i32, i32
  }
  func.func @transform_11(%arg0: i32) -> (i32, i32) {
    %c0_i32 = arith.constant 0 : i32
    %c0_i32_0 = arith.constant 0 : i32
    %c0_i32_1 = arith.constant 0 : i32
    return %c0_i32, %c0_i32_0 : i32, i32
  }
  func.func @transform_12(%arg0: i32) -> (i32, i32) {
    %c0_i32 = arith.constant 0 : i32
    %c0_i32_0 = arith.constant 0 : i32
    %c0_i32_1 = arith.constant 0 : i32
    return %c0_i32, %c0_i32_0 : i32, i32
  }
}

</mosaic_0001>

<llo_original>
// kernel: tpu_custom_call.1
$region0: #{tpu_custom_call.1}
  #allocation0 [shape = 'u32[]', space=smem, size = 0x4, offset = 0x4, fixed_abs, tag = 'smem constant byte address 0x4 - core index']
  #allocation1 [shape = 'u32[72,128]{1,0:T(1,128)}', space=vmem, size = 0x9000, scoped, tag = 'internal scratch']
  %s0 = inlined_call_operand.vmem [shape: f32[16,32], index: 0, kind: input, shape index: {}]
  %s1 = inlined_call_operand.vmem [shape: f32[32,192], index: 1, kind: input, shape index: {}]
  %s2 = inlined_call_operand.hbm [shape: f32[64,64], index: 2, kind: input, shape index: {}]
  %s3 = inlined_call_operand.vmem [shape: f32[16,64], index: 3, kind: input, shape index: {}]
  %s4 = inlined_call_operand.hbm [shape: f32[4,64], index: 4, kind: input, shape index: {}]
  %s5 = inlined_call_operand.hbm [shape: f32[64,64], index: 5, kind: input, shape index: {}]
  %s6 = inlined_call_operand.hbm [shape: f32[64,64], index: 6, kind: input, shape index: {}]
  %s7 = inlined_call_operand.hbm [shape: f32[64,64], index: 7, kind: input, shape index: {}]
  %s8 = inlined_call_operand.vmem [shape: f32[1,64], index: 8, kind: input, shape index: {}]
  %s9 = inlined_call_operand.vmem [shape: f32[1,64], index: 9, kind: input, shape index: {}]
  %s10 = inlined_call_operand.vmem [shape: f32[64,32], index: 10, kind: input, shape index: {}]
  %s11 = inlined_call_operand.vmem [shape: f32[1,32], index: 11, kind: input, shape index: {}]
  %s12 = inlined_call_operand.hbm [shape: f32[16,32], index: 12, kind: output, shape index: {}]
  %s13 = sld [smem:[#allocation0]]
  $region78: #{tpu_custom_call.1} parent=0
    _
  %s15 = ssub.s32 1, %s13
  %s16 = scalar_select 0, %s15, %s13
  $region1: #{tpu_custom_call.1} parent=0
    #allocation2 [shape = 'u8[32768]{0}', space=vmem, size = 0x8000, scoped, tag = 'input window, operand 2, single buffered']
    #allocation3 [shape = 's32[1]{0}', space=sflag, size = 0x4, scoped, tag = 'scoped memory for tpu_custom_call.1']
    #allocation4 [shape = 's32[1]{0}', space=sflag, size = 0x4, scoped, tag = 'scoped memory for tpu_custom_call.1']
    #allocation5 [shape = 'u8[2048]{0}', space=vmem, size = 0x800, scoped, tag = 'input window, operand 4, single buffered']
    #allocation6 [shape = 's32[1]{0}', space=sflag, size = 0x4, scoped, tag = 'scoped memory for tpu_custom_call.1']
    #allocation7 [shape = 'u8[32768]{0}', space=vmem, size = 0x8000, scoped, tag = 'input window, operand 5, single buffered']
    #allocation8 [shape = 'u8[32768]{0}', space=vmem, size = 0x8000, scoped, tag = 'input window, operand 6, single buffered']
    #allocation9 [shape = 's32[1]{0}', space=sflag, size = 0x4, scoped, tag = 'scoped memory for tpu_custom_call.1']
    #allocation10 [shape = 'u8[32768]{0}', space=vmem, size = 0x8000, scoped, tag = 'input window, operand 7, single buffered']
    #allocation11 [shape = 'u8[8192]{0}', space=vmem, size = 0x2000, scoped, tag = 'output window, operand 0, single buffered']
    %17 = vsyncpa [#allocation3], 0
    %18 = vsyncpa [#allocation6], 0
    %19 = vsyncpa [#allocation9], 0
    %20 = vsyncpa [#allocation4], 0
    // Predicated region
    $region2: #{tpu_custom_call.1} parent=1 // pred_check
      _
    $region3: #{tpu_custom_call.1} parent=1 // pred_check_branch
      %22 = sbr.rel (0) target = $region5
    $region4: #{tpu_custom_call.1} parent=1 // pred_region
      _
    $region5: #{tpu_custom_call.1} parent=1 // pred_fallthru
      _
    // Predicated region
    $region6: #{tpu_custom_call.1} parent=1 // pred_check
      _
    $region7: #{tpu_custom_call.1} parent=1 // pred_check_branch
      %24 = sbr.rel (0) target = $region9
    $region8: #{tpu_custom_call.1} parent=1 // pred_region
      _
    $region9: #{tpu_custom_call.1} parent=1 // pred_fallthru
      _
    // Predicated region
    $region10: #{tpu_custom_call.1} parent=1 // pred_check
      _
    $region11: #{tpu_custom_call.1} parent=1 // pred_check_branch
      %26 = sbr.rel (0) target = $region13
    $region12: #{tpu_custom_call.1} parent=1 // pred_region
      %28 = vsyncadd [#allocation3], 0
      %s29 = sshll.u32 %s2, 4
      %s30 = int_to_ptr.hbm [resolvable:$true] %s29
      %s31 = sshll.u32 [#allocation2], 4
      %s32 = int_to_ptr.vmem [resolvable:$true] %s31
      %37 = dma.hbm_to_vmem [thread:$0]  %s30, 1024, %s32, [#allocation3], 128, 128, 8
    $region13: #{tpu_custom_call.1} parent=1 // pred_fallthru
      _
    // Predicated region
    $region14: #{tpu_custom_call.1} parent=1 // pred_check
      _
    $region15: #{tpu_custom_call.1} parent=1 // pred_check_branch
      %39 = sbr.rel (0) target = $region17
    $region16: #{tpu_custom_call.1} parent=1 // pred_region
      _
    $region17: #{tpu_custom_call.1} parent=1 // pred_fallthru
      _
    // Predicated region
    $region18: #{tpu_custom_call.1} parent=1 // pred_check
      _
    $region19: #{tpu_custom_call.1} parent=1 // pred_check_branch
      %41 = sbr.rel (0) target = $region21
    $region20: #{tpu_custom_call.1} parent=1 // pred_region
      %43 = vsyncadd [#allocation6], 0
      %s45 = sshll.u32 %s4, 4
      %s46 = int_to_ptr.hbm [resolvable:$true] %s45
      %s47 = sshll.u32 [#allocation5], 4
      %s48 = int_to_ptr.vmem [resolvable:$true] %s47
      %50 = dma.hbm_to_vmem [thread:$0]  %s46, 64, %s48, [#allocation6]
    $region21: #{tpu_custom_call.1} parent=1 // pred_fallthru
      _
    // Predicated region
    $region22: #{tpu_custom_call.1} parent=1 // pred_check
      _
    $region23: #{tpu_custom_call.1} parent=1 // pred_check_branch
      %52 = sbr.rel (0) target = $region25
    $region24: #{tpu_custom_call.1} parent=1 // pred_region
      %54 = vsyncadd [#allocation6], 0
      %s55 = sshll.u32 %s5, 4
      %s56 = int_to_ptr.hbm [resolvable:$true] %s55
      %s57 = sshll.u32 [#allocation7], 4
      %s58 = int_to_ptr.vmem [resolvable:$true] %s57
      %63 = dma.hbm_to_vmem [thread:$0]  %s56, 1024, %s58, [#allocation6], 128, 128, 8
    $region25: #{tpu_custom_call.1} parent=1 // pred_fallthru
      _
    // Predicated region
    $region26: #{tpu_custom_call.1} parent=1 // pred_check
      _
    $region27: #{tpu_custom_call.1} parent=1 // pred_check_branch
      %65 = sbr.rel (0) target = $region29
    $region28: #{tpu_custom_call.1} parent=1 // pred_region
      %67 = vsyncadd [#allocation9], 0
      %s68 = sshll.u32 %s6, 4
      %s69 = int_to_ptr.hbm [resolvable:$true] %s68
      %s70 = sshll.u32 [#allocation8], 4
      %s71 = int_to_ptr.vmem [resolvable:$true] %s70
      %76 = dma.hbm_to_vmem [thread:$0]  %s69, 1024, %s71, [#allocation9], 128, 128, 8
    $region29: #{tpu_custom_call.1} parent=1 // pred_fallthru
      _
    // Predicated region
    $region30: #{tpu_custom_call.1} parent=1 // pred_check
      _
    $region31: #{tpu_custom_call.1} parent=1 // pred_check_branch
      %78 = sbr.rel (0) target = $region33
    $region32: #{tpu_custom_call.1} parent=1 // pred_region
      %80 = vsyncadd [#allocation9], 0
      %s81 = sshll.u32 %s7, 4
      %s82 = int_to_ptr.hbm [resolvable:$true] %s81
      %s83 = sshll.u32 [#allocation10], 4
      %s84 = int_to_ptr.vmem [resolvable:$true] %s83
      %89 = dma.hbm_to_vmem [thread:$0]  %s82, 1024, %s84, [#allocation9], 128, 128, 8
    $region33: #{tpu_custom_call.1} parent=1 // pred_fallthru
      _
    // Predicated region
    $region34: #{tpu_custom_call.1} parent=1 // pred_check
      _
    $region35: #{tpu_custom_call.1} parent=1 // pred_check_branch
      %91 = sbr.rel (0) target = $region37
    $region36: #{tpu_custom_call.1} parent=1 // pred_region
      _
    $region37: #{tpu_custom_call.1} parent=1 // pred_fallthru
      _
    // Predicated region
    $region38: #{tpu_custom_call.1} parent=1 // pred_check
      _
    $region39: #{tpu_custom_call.1} parent=1 // pred_check_branch
      %93 = sbr.rel (0) target = $region41
    $region40: #{tpu_custom_call.1} parent=1 // pred_region
      _
    $region41: #{tpu_custom_call.1} parent=1 // pred_fallthru
      _
    // Predicated region
    $region42: #{tpu_custom_call.1} parent=1 // pred_check
      _
    $region43: #{tpu_custom_call.1} parent=1 // pred_check_branch
      %95 = sbr.rel (0) target = $region45
    $region44: #{tpu_custom_call.1} parent=1 // pred_region
      _
    $region45: #{tpu_custom_call.1} parent=1 // pred_fallthru
      _
    // Predicated region
    $region46: #{tpu_custom_call.1} parent=1 // pred_check
      _
    $region47: #{tpu_custom_call.1} parent=1 // pred_check_branch
      %97 = sbr.rel (0) target = $region49
    $region48: #{tpu_custom_call.1} parent=1 // pred_region
      _
    $region49: #{tpu_custom_call.1} parent=1 // pred_fallthru
      _
    // Predicated region
    $region50: #{tpu_custom_call.1} parent=1 // pred_check
      _
    $region51: #{tpu_custom_call.1} parent=1 // pred_check_branch
      %99 = sbr.rel (0) target = $region53
    $region52: #{tpu_custom_call.1} parent=1 // pred_region
      %101 = dma.done [#allocation3], 1024
    $region53: #{tpu_custom_call.1} parent=1 // pred_fallthru
      _
    // Predicated region
    $region54: #{tpu_custom_call.1} parent=1 // pred_check
      _
    $region55: #{tpu_custom_call.1} parent=1 // pred_check_branch
      %103 = sbr.rel (0) target = $region57
    $region56: #{tpu_custom_call.1} parent=1 // pred_region
      %105 = dma.done [#allocation6], 64
    $region57: #{tpu_custom_call.1} parent=1 // pred_fallthru
      _
    // Predicated region
    $region58: #{tpu_custom_call.1} parent=1 // pred_check
      _
    $region59: #{tpu_custom_call.1} parent=1 // pred_check_branch
      %107 = sbr.rel (0) target = $region61
    $region60: #{tpu_custom_call.1} parent=1 // pred_region
      %109 = dma.done [#allocation6], 1024
    $region61: #{tpu_custom_call.1} parent=1 // pred_fallthru
      _
    // Predicated region
    $region62: #{tpu_custom_call.1} parent=1 // pred_check
      _
    $region63: #{tpu_custom_call.1} parent=1 // pred_check_branch
      %111 = sbr.rel (0) target = $region65
    $region64: #{tpu_custom_call.1} parent=1 // pred_region
      %113 = dma.done [#allocation9], 1024
    $region65: #{tpu_custom_call.1} parent=1 // pred_fallthru
      _
    // Predicated region
    $region66: #{tpu_custom_call.1} parent=1 // pred_check
      _
    $region67: #{tpu_custom_call.1} parent=1 // pred_check_branch
      %115 = sbr.rel (0) target = $region69
    $region68: #{tpu_custom_call.1} parent=1 // pred_region
      %117 = dma.done [#allocation9], 1024
    $region69: #{tpu_custom_call.1} parent=1 // pred_fallthru
      _
    %v118 = vld [vmem:[%s0] sm:$0xff]
    %v119 = vld [vmem:[%s0 + $0x8] sm:$0xff]
    %v120 = vld [vmem:[#allocation2] sm:$0xff]
    %v121 = vld [vmem:[#allocation2 + $0x8] sm:$0xff]
    %v122 = vld [vmem:[#allocation2 + $0x10] sm:$0xff]
    %v123 = vld [vmem:[#allocation2 + $0x18] sm:$0xff]
    %v124 = vld [vmem:[#allocation2 + $0x20] sm:$0xff]
    %v125 = vld [vmem:[#allocation2 + $0x28] sm:$0xff]
    %v126 = vld [vmem:[#allocation2 + $0x30] sm:$0xff]
    %v127 = vld [vmem:[#allocation2 + $0x38] sm:$0xff]
    %v128 = vld [vmem:[%s3] sm:$0xff]
    %v129 = vld [vmem:[%s3 + $0x8] sm:$0xff]
    %v130 = vld [vmem:[%s1] sm:$0xff]
    %v131 = vld [vmem:[%s1 + $0x8] sm:$0xff]
    %v132 = vld [vmem:[%s1 + $0x10] sm:$0xff]
    %v133 = vld [vmem:[%s1 + $0x18] sm:$0xff]
    %v134 = vld [vmem:[%s1 + $0x20] sm:$0xff]
    %v135 = vld [vmem:[%s1 + $0x28] sm:$0xff]
    %v136 = vld [vmem:[%s1 + $0x30] sm:$0xff]
    %v137 = vld [vmem:[%s1 + $0x38] sm:$0xff]
    %vm138 = vcmask 261120
    %v140 = vsel %vm138, %v118, 0
    %v143 = vsel %vm138, %v119, 0
    %145 = vmatpush.msra.mxu0 0.0
    %146 = vmatpush.msra.mxu0 0.0
    %147 = vmatpush.msra.mxu0 0.0
    %148 = vmatpush.msra.mxu0 0.0
    %149 = vmatpush.msra.mxu0 0.0
    %150 = vmatpush.msra.mxu0 0.0
    %151 = vmatpush.msra.mxu0 0.0
    %152 = vmatpush.msra.mxu0 0.0
    %153 = vmatpush.msra.mxu0 0.0
    %154 = vmatpush.msra.mxu0 0.0
    %155 = vmatpush.msra.mxu0 0.0
    %156 = vmatpush.msra.mxu0 0.0
    %v157 = vand.u32 %v136, 4294901760
    %158 = vmatpush.msra.mxu0 %v157
    %v159 = vand.u32 %v134, 4294901760
    %160 = vmatpush.msra.mxu0 %v159
    %v161 = vand.u32 %v132, 4294901760
    %162 = vmatpush.msra.mxu0 %v161
    %v163 = vand.u32 %v130, 4294901760
    %164 = vmatpush.msra.mxu0 %v163
    %v165 = vand.u32 %v140, 4294901760
    %v166 = vsub.f32 %v140, %v165
    %v167 = vand.u32 %v166, 4294901760
    %v168 = vsub.f32 %v166, %v167
    %v169 = vand.u32 %v168, 4294901760
    %170 = vmatmul.f32.gmra.mxu0 %v169
    %v171 = vpop.f32.mrf.mxu0
    %v172 = vadd.f32 0.0, %v171
    %v173 = vand.u32 %v143, 4294901760
    %v174 = vsub.f32 %v143, %v173
    %v175 = vand.u32 %v174, 4294901760
    %v176 = vsub.f32 %v174, %v175
    %v177 = vand.u32 %v176, 4294901760
    %178 = vmatmul.f32.gmra.mxu0 %v177
    %v179 = vpop.f32.mrf.mxu0
    %v180 = vadd.f32 0.0, %v179
    %181 = vdwg.mxu0
    %182 = vmatpush.msra.mxu0 0.0
    %183 = vmatpush.msra.mxu0 0.0
    %184 = vmatpush.msra.mxu0 0.0
    %185 = vmatpush.msra.mxu0 0.0
    %186 = vmatpush.msra.mxu0 0.0
    %187 = vmatpush.msra.mxu0 0.0
    %188 = vmatpush.msra.mxu0 0.0
    %189 = vmatpush.msra.mxu0 0.0
    %190 = vmatpush.msra.mxu0 0.0
    %191 = vmatpush.msra.mxu0 0.0
    %192 = vmatpush.msra.mxu0 0.0
    %193 = vmatpush.msra.mxu0 0.0
    %v194 = vand.u32 %v136, 4294901760
    %v195 = vsub.f32 %v136, %v194
    %v196 = vand.u32 %v195, 4294901760
    %v197 = vsub.f32 %v195, %v196
    %v198 = vand.u32 %v197, 4294901760
    %199 = vmatpush.msra.mxu0 %v198
    %v200 = vand.u32 %v134, 4294901760
    %v201 = vsub.f32 %v134, %v200
    %v202 = vand.u32 %v201, 4294901760
    %v203 = vsub.f32 %v201, %v202
    %v204 = vand.u32 %v203, 4294901760
    %205 = vmatpush.msra.mxu0 %v204
    %v206 = vand.u32 %v132, 4294901760
    %v207 = vsub.f32 %v132, %v206
    %v208 = vand.u32 %v207, 4294901760
    %v209 = vsub.f32 %v207, %v208
    %v210 = vand.u32 %v209, 4294901760
    %211 = vmatpush.msra.mxu0 %v210
    %v212 = vand.u32 %v130, 4294901760
    %v213 = vsub.f32 %v130, %v212
    %v214 = vand.u32 %v213, 4294901760
    %v215 = vsub.f32 %v213, %v214
    %v216 = vand.u32 %v215, 4294901760
    %217 = vmatpush.msra.mxu0 %v216
    %v218 = vand.u32 %v140, 4294901760
    %219 = vmatmul.f32.gmra.mxu0 %v218
    %v220 = vpop.f32.mrf.mxu0
    %v221 = vadd.f32 %v172, %v220
    %v222 = vand.u32 %v143, 4294901760
    %223 = vmatmul.f32.gmra.mxu0 %v222
    %v224 = vpop.f32.mrf.mxu0
    %v225 = vadd.f32 %v180, %v224
    %226 = vdwg.mxu0
    %227 = vmatpush.msra.mxu0 0.0
    %228 = vmatpush.msra.mxu0 0.0
    %229 = vmatpush.msra.mxu0 0.0
    %230 = vmatpush.msra.mxu0 0.0
    %231 = vmatpush.msra.mxu0 0.0
    %232 = vmatpush.msra.mxu0 0.0
    %233 = vmatpush.msra.mxu0 0.0
    %234 = vmatpush.msra.mxu0 0.0
    %235 = vmatpush.msra.mxu0 0.0
    %236 = vmatpush.msra.mxu0 0.0
    %237 = vmatpush.msra.mxu0 0.0
    %238 = vmatpush.msra.mxu0 0.0
    %v239 = vand.u32 %v136, 4294901760
    %v240 = vsub.f32 %v136, %v239
    %241 = vmatpush.msra.mxu0 %v240
    %v242 = vand.u32 %v134, 4294901760
    %v243 = vsub.f32 %v134, %v242
    %244 = vmatpush.msra.mxu0 %v243
    %v245 = vand.u32 %v132, 4294901760
    %v246 = vsub.f32 %v132, %v245
    %247 = vmatpush.msra.mxu0 %v246
    %v248 = vand.u32 %v130, 4294901760
    %v249 = vsub.f32 %v130, %v248
    %250 = vmatpush.msra.mxu0 %v249
    %v251 = vand.u32 %v140, 4294901760
    %v252 = vsub.f32 %v140, %v251
    %253 = vmatmul.f32.gmra.mxu0 %v252
    %v254 = vpop.f32.mrf.mxu0
    %v255 = vadd.f32 %v221, %v254
    %v256 = vand.u32 %v143, 4294901760
    %v257 = vsub.f32 %v143, %v256
    %258 = vmatmul.f32.gmra.mxu0 %v257
    %v259 = vpop.f32.mrf.mxu0
    %v260 = vadd.f32 %v225, %v259
    %261 = vdwg.mxu0
    %262 = vmatpush.msra.mxu0 0.0
    %263 = vmatpush.msra.mxu0 0.0
    %264 = vmatpush.msra.mxu0 0.0
    %265 = vmatpush.msra.mxu0 0.0
    %266 = vmatpush.msra.mxu0 0.0
    %267 = vmatpush.msra.mxu0 0.0
    %268 = vmatpush.msra.mxu0 0.0
    %269 = vmatpush.msra.mxu0 0.0
    %270 = vmatpush.msra.mxu0 0.0
    %271 = vmatpush.msra.mxu0 0.0
    %272 = vmatpush.msra.mxu0 0.0
    %273 = vmatpush.msra.mxu0 0.0
    %v274 = vand.u32 %v136, 4294901760
    %275 = vmatpush.msra.mxu0 %v274
    %v276 = vand.u32 %v134, 4294901760
    %277 = vmatpush.msra.mxu0 %v276
    %v278 = vand.u32 %v132, 4294901760
    %279 = vmatpush.msra.mxu0 %v278
    %v280 = vand.u32 %v130, 4294901760
    %281 = vmatpush.msra.mxu0 %v280
    %v282 = vand.u32 %v140, 4294901760
    %v283 = vsub.f32 %v140, %v282
    %v284 = vand.u32 %v283, 4294901760
    %285 = vmatmul.f32.gmra.mxu0 %v284
    %v286 = vpop.f32.mrf.mxu0
    %v287 = vadd.f32 %v255, %v286
    %v288 = vand.u32 %v143, 4294901760
    %v289 = vsub.f32 %v143, %v288
    %v290 = vand.u32 %v289, 4294901760
    %291 = vmatmul.f32.gmra.mxu0 %v290
    %v292 = vpop.f32.mrf.mxu0
    %v293 = vadd.f32 %v260, %v292
    %294 = vdwg.mxu0
    %295 = vmatpush.msra.mxu0 0.0
    %296 = vmatpush.msra.mxu0 0.0
    %297 = vmatpush.msra.mxu0 0.0
    %298 = vmatpush.msra.mxu0 0.0
    %299 = vmatpush.msra.mxu0 0.0
    %300 = vmatpush.msra.mxu0 0.0
    %301 = vmatpush.msra.mxu0 0.0
    %302 = vmatpush.msra.mxu0 0.0
    %303 = vmatpush.msra.mxu0 0.0
    %304 = vmatpush.msra.mxu0 0.0
    %305 = vmatpush.msra.mxu0 0.0
    %306 = vmatpush.msra.mxu0 0.0
    %v307 = vand.u32 %v136, 4294901760
    %v308 = vsub.f32 %v136, %v307
    %v309 = vand.u32 %v308, 4294901760
    %310 = vmatpush.msra.mxu0 %v309
    %v311 = vand.u32 %v134, 4294901760
    %v312 = vsub.f32 %v134, %v311
    %v313 = vand.u32 %v312, 4294901760
    %314 = vmatpush.msra.mxu0 %v313
    %v315 = vand.u32 %v132, 4294901760
    %v316 = vsub.f32 %v132, %v315
    %v317 = vand.u32 %v316, 4294901760
    %318 = vmatpush.msra.mxu0 %v317
    %v319 = vand.u32 %v130, 4294901760
    %v320 = vsub.f32 %v130, %v319
    %v321 = vand.u32 %v320, 4294901760
    %322 = vmatpush.msra.mxu0 %v321
    %v323 = vand.u32 %v140, 4294901760
    %324 = vmatmul.f32.gmra.mxu0 %v323
    %v325 = vpop.f32.mrf.mxu0
    %v326 = vadd.f32 %v287, %v325
    %v327 = vand.u32 %v143, 4294901760
    %328 = vmatmul.f32.gmra.mxu0 %v327
    %v329 = vpop.f32.mrf.mxu0
    %v330 = vadd.f32 %v293, %v329
    %331 = vdwg.mxu0
    %332 = vmatpush.msra.mxu0 0.0
    %333 = vmatpush.msra.mxu0 0.0
    %334 = vmatpush.msra.mxu0 0.0
    %335 = vmatpush.msra.mxu0 0.0
    %336 = vmatpush.msra.mxu0 0.0
    %337 = vmatpush.msra.mxu0 0.0
    %338 = vmatpush.msra.mxu0 0.0
    %339 = vmatpush.msra.mxu0 0.0
    %340 = vmatpush.msra.mxu0 0.0
    %341 = vmatpush.msra.mxu0 0.0
    %342 = vmatpush.msra.mxu0 0.0
    %343 = vmatpush.msra.mxu0 0.0
    %v344 = vand.u32 %v136, 4294901760
    %345 = vmatpush.msra.mxu0 %v344
    %v346 = vand.u32 %v134, 4294901760
    %347 = vmatpush.msra.mxu0 %v346
    %v348 = vand.u32 %v132, 4294901760
    %349 = vmatpush.msra.mxu0 %v348
    %v350 = vand.u32 %v130, 4294901760
    %351 = vmatpush.msra.mxu0 %v350
    %v352 = vand.u32 %v140, 4294901760
    %353 = vmatmul.f32.gmra.mxu0 %v352
    %v354 = vpop.f32.mrf.mxu0
    %v355 = vadd.f32 %v326, %v354
    %v356 = vand.u32 %v143, 4294901760
    %357 = vmatmul.f32.gmra.mxu0 %v356
    %v358 = vpop.f32.mrf.mxu0
    %v359 = vadd.f32 %v330, %v358
    %360 = vdwg.mxu0
    %361 = vmatpush.msra.mxu0 0.0
    %362 = vmatpush.msra.mxu0 0.0
    %363 = vmatpush.msra.mxu0 0.0
    %364 = vmatpush.msra.mxu0 0.0
    %365 = vmatpush.msra.mxu0 0.0
    %366 = vmatpush.msra.mxu0 0.0
    %367 = vmatpush.msra.mxu0 0.0
    %368 = vmatpush.msra.mxu0 0.0
    %369 = vmatpush.msra.mxu0 0.0
    %370 = vmatpush.msra.mxu0 0.0
    %371 = vmatpush.msra.mxu0 0.0
    %372 = vmatpush.msra.mxu0 0.0
    %v373 = vand.u32 %v137, 4294901760
    %374 = vmatpush.msra.mxu0 %v373
    %v375 = vand.u32 %v135, 4294901760
    %376 = vmatpush.msra.mxu0 %v375
    %v377 = vand.u32 %v133, 4294901760
    %378 = vmatpush.msra.mxu0 %v377
    %v379 = vand.u32 %v131, 4294901760
    %380 = vmatpush.msra.mxu0 %v379
    %v381 = vand.u32 %v140, 4294901760
    %v382 = vsub.f32 %v140, %v381
    %v383 = vand.u32 %v382, 4294901760
    %v384 = vsub.f32 %v382, %v383
    %v385 = vand.u32 %v384, 4294901760
    %386 = vmatmul.f32.gmra.mxu0 %v385
    %v387 = vpop.f32.mrf.mxu0
    %v388 = vadd.f32 0.0, %v387
    %v389 = vand.u32 %v143, 4294901760
    %v390 = vsub.f32 %v143, %v389
    %v391 = vand.u32 %v390, 4294901760
    %v392 = vsub.f32 %v390, %v391
    %v393 = vand.u32 %v392, 4294901760
    %394 = vmatmul.f32.gmra.mxu0 %v393
    %v395 = vpop.f32.mrf.mxu0
    %v396 = vadd.f32 0.0, %v395
    %397 = vdwg.mxu0
    %398 = vmatpush.msra.mxu0 0.0
    %399 = vmatpush.msra.mxu0 0.0
    %400 = vmatpush.msra.mxu0 0.0
    %401 = vmatpush.msra.mxu0 0.0
    %402 = vmatpush.msra.mxu0 0.0
    %403 = vmatpush.msra.mxu0 0.0
    %404 = vmatpush.msra.mxu0 0.0
    %405 = vmatpush.msra.mxu0 0.0
    %406 = vmatpush.msra.mxu0 0.0
    %407 = vmatpush.msra.mxu0 0.0
    %408 = vmatpush.msra.mxu0 0.0
    %409 = vmatpush.msra.mxu0 0.0
    %v410 = vand.u32 %v137, 4294901760
    %v411 = vsub.f32 %v137, %v410
    %v412 = vand.u32 %v411, 4294901760
    %v413 = vsub.f32 %v411, %v412
    %v414 = vand.u32 %v413, 4294901760
    %415 = vmatpush.msra.mxu0 %v414
    %v416 = vand.u32 %v135, 4294901760
    %v417 = vsub.f32 %v135, %v416
    %v418 = vand.u32 %v417, 4294901760
    %v419 = vsub.f32 %v417, %v418
    %v420 = vand.u32 %v419, 4294901760
    %421 = vmatpush.msra.mxu0 %v420
    %v422 = vand.u32 %v133, 4294901760
    %v423 = vsub.f32 %v133, %v422
    %v424 = vand.u32 %v423, 4294901760
    %v425 = vsub.f32 %v423, %v424
    %v426 = vand.u32 %v425, 4294901760
    %427 = vmatpush.msra.mxu0 %v426
    %v428 = vand.u32 %v131, 4294901760
    %v429 = vsub.f32 %v131, %v428
    %v430 = vand.u32 %v429, 4294901760
    %v431 = vsub.f32 %v429, %v430
    %v432 = vand.u32 %v431, 4294901760
    %433 = vmatpush.msra.mxu0 %v432
    %v434 = vand.u32 %v140, 4294901760
    %435 = vmatmul.f32.gmra.mxu0 %v434
    %v436 = vpop.f32.mrf.mxu0
    %v437 = vadd.f32 %v388, %v436
    %v438 = vand.u32 %v143, 4294901760
    %439 = vmatmul.f32.gmra.mxu0 %v438
    %v440 = vpop.f32.mrf.mxu0
    %v441 = vadd.f32 %v396, %v440
    %442 = vdwg.mxu0
    %443 = vmatpush.msra.mxu0 0.0
    %444 = vmatpush.msra.mxu0 0.0
    %445 = vmatpush.msra.mxu0 0.0
    %446 = vmatpush.msra.mxu0 0.0
    %447 = vmatpush.msra.mxu0 0.0
    %448 = vmatpush.msra.mxu0 0.0
    %449 = vmatpush.msra.mxu0 0.0
    %450 = vmatpush.msra.mxu0 0.0
    %451 = vmatpush.msra.mxu0 0.0
    %452 = vmatpush.msra.mxu0 0.0
    %453 = vmatpush.msra.mxu0 0.0
    %454 = vmatpush.msra.mxu0 0.0
    %v455 = vand.u32 %v137, 4294901760
    %v456 = vsub.f32 %v137, %v455
    %457 = vmatpush.msra.mxu0 %v456
    %v458 = vand.u32 %v135, 4294901760
    %v459 = vsub.f32 %v135, %v458
    %460 = vmatpush.msra.mxu0 %v459
    %v461 = vand.u32 %v133, 4294901760
    %v462 = vsub.f32 %v133, %v461
    %463 = vmatpush.msra.mxu0 %v462
    %v464 = vand.u32 %v131, 4294901760
    %v465 = vsub.f32 %v131, %v464
    %466 = vmatpush.msra.mxu0 %v465
    %v467 = vand.u32 %v140, 4294901760
    %v468 = vsub.f32 %v140, %v467
    %469 = vmatmul.f32.gmra.mxu0 %v468
    %v470 = vpop.f32.mrf.mxu0
    %v471 = vadd.f32 %v437, %v470
    %v472 = vand.u32 %v143, 4294901760
    %v473 = vsub.f32 %v143, %v472
    %474 = vmatmul.f32.gmra.mxu0 %v473
    %v475 = vpop.f32.mrf.mxu0
    %v476 = vadd.f32 %v441, %v475
    %477 = vdwg.mxu0
    %478 = vmatpush.msra.mxu0 0.0
    %479 = vmatpush.msra.mxu0 0.0
    %480 = vmatpush.msra.mxu0 0.0
    %481 = vmatpush.msra.mxu0 0.0
    %482 = vmatpush.msra.mxu0 0.0
    %483 = vmatpush.msra.mxu0 0.0
    %484 = vmatpush.msra.mxu0 0.0
    %485 = vmatpush.msra.mxu0 0.0
    %486 = vmatpush.msra.mxu0 0.0
    %487 = vmatpush.msra.mxu0 0.0
    %488 = vmatpush.msra.mxu0 0.0
    %489 = vmatpush.msra.mxu0 0.0
    %v490 = vand.u32 %v137, 4294901760
    %491 = vmatpush.msra.mxu0 %v490
    %v492 = vand.u32 %v135, 4294901760
    %493 = vmatpush.msra.mxu0 %v492
    %v494 = vand.u32 %v133, 4294901760
    %495 = vmatpush.msra.mxu0 %v494
    %v496 = vand.u32 %v131, 4294901760
    %497 = vmatpush.msra.mxu0 %v496
    %v498 = vand.u32 %v140, 4294901760
    %v499 = vsub.f32 %v140, %v498
    %v500 = vand.u32 %v499, 4294901760
    %501 = vmatmul.f32.gmra.mxu0 %v500
    %v502 = vpop.f32.mrf.mxu0
    %v503 = vadd.f32 %v471, %v502
    %v504 = vand.u32 %v143, 4294901760
    %v505 = vsub.f32 %v143, %v504
    %v506 = vand.u32 %v505, 4294901760
    %507 = vmatmul.f32.gmra.mxu0 %v506
    %v508 = vpop.f32.mrf.mxu0
    %v509 = vadd.f32 %v476, %v508
    %510 = vdwg.mxu0
    %511 = vmatpush.msra.mxu0 0.0
    %512 = vmatpush.msra.mxu0 0.0
    %513 = vmatpush.msra.mxu0 0.0
    %514 = vmatpush.msra.mxu0 0.0
    %515 = vmatpush.msra.mxu0 0.0
    %516 = vmatpush.msra.mxu0 0.0
    %517 = vmatpush.msra.mxu0 0.0
    %518 = vmatpush.msra.mxu0 0.0
    %519 = vmatpush.msra.mxu0 0.0
    %520 = vmatpush.msra.mxu0 0.0
    %521 = vmatpush.msra.mxu0 0.0
    %522 = vmatpush.msra.mxu0 0.0
    %v523 = vand.u32 %v137, 4294901760
    %v524 = vsub.f32 %v137, %v523
    %v525 = vand.u32 %v524, 4294901760
    %526 = vmatpush.msra.mxu0 %v525
    %v527 = vand.u32 %v135, 4294901760
    %v528 = vsub.f32 %v135, %v527
    %v529 = vand.u32 %v528, 4294901760
    %530 = vmatpush.msra.mxu0 %v529
    %v531 = vand.u32 %v133, 4294901760
    %v532 = vsub.f32 %v133, %v531
    %v533 = vand.u32 %v532, 4294901760
    %534 = vmatpush.msra.mxu0 %v533
    %v535 = vand.u32 %v131, 4294901760
    %v536 = vsub.f32 %v131, %v535
    %v537 = vand.u32 %v536, 4294901760
    %538 = vmatpush.msra.mxu0 %v537
    %v539 = vand.u32 %v140, 4294901760
    %540 = vmatmul.f32.gmra.mxu0 %v539
    %v541 = vpop.f32.mrf.mxu0
    %v542 = vadd.f32 %v503, %v541
    %v543 = vand.u32 %v143, 4294901760
    %544 = vmatmul.f32.gmra.mxu0 %v543
    %v545 = vpop.f32.mrf.mxu0
    %v546 = vadd.f32 %v509, %v545
    %547 = vdwg.mxu0
    %548 = vmatpush.msra.mxu0 0.0
    %549 = vmatpush.msra.mxu0 0.0
    %550 = vmatpush.msra.mxu0 0.0
    %551 = vmatpush.msra.mxu0 0.0
    %552 = vmatpush.msra.mxu0 0.0
    %553 = vmatpush.msra.mxu0 0.0
    %554 = vmatpush.msra.mxu0 0.0
    %555 = vmatpush.msra.mxu0 0.0
    %556 = vmatpush.msra.mxu0 0.0
    %557 = vmatpush.msra.mxu0 0.0
    %558 = vmatpush.msra.mxu0 0.0
    %559 = vmatpush.msra.mxu0 0.0
    %v560 = vand.u32 %v137, 4294901760
    %561 = vmatpush.msra.mxu0 %v560
    %v562 = vand.u32 %v135, 4294901760
    %563 = vmatpush.msra.mxu0 %v562
    %v564 = vand.u32 %v133, 4294901760
    %565 = vmatpush.msra.mxu0 %v564
    %v566 = vand.u32 %v131, 4294901760
    %567 = vmatpush.msra.mxu0 %v566
    %v568 = vand.u32 %v140, 4294901760
    %569 = vmatmul.f32.gmra.mxu0 %v568
    %v570 = vpop.f32.mrf.mxu0
    %v571 = vadd.f32 %v542, %v570
    %v572 = vand.u32 %v143, 4294901760
    %573 = vmatmul.f32.gmra.mxu0 %v572
    %v574 = vpop.f32.mrf.mxu0
    %v575 = vadd.f32 %v546, %v574
    %576 = vdwg.mxu0
    %585 = vrot.lane.b32.xlu0 %v120, 64
    %v586 = vpop.permute.xlu0 %585
    %587 = vrot.lane.b32.xlu0 %v121, 64
    %v588 = vpop.permute.xlu0 %587
    %589 = vrot.lane.b32.xlu0 %v122, 64
    %v590 = vpop.permute.xlu0 %589
    %591 = vrot.lane.b32.xlu0 %v123, 64
    %v592 = vpop.permute.xlu0 %591
    %593 = vrot.lane.b32.xlu0 %v124, 64
    %v594 = vpop.permute.xlu0 %593
    %595 = vrot.lane.b32.xlu0 %v125, 64
    %v596 = vpop.permute.xlu0 %595
    %597 = vrot.lane.b32.xlu0 %v126, 64
    %v598 = vpop.permute.xlu0 %597
    %599 = vrot.lane.b32.xlu0 %v127, 64
    %v600 = vpop.permute.xlu0 %599
    %v609 = vmul.f32 %v355, %v586
    %v610 = vmul.f32 %v359, %v588
    %v611 = vmul.f32 %v355, %v590
    %v612 = vmul.f32 %v359, %v592
    %v613 = vmul.f32 %v355, %v594
    %v614 = vmul.f32 %v359, %v596
    %v615 = vmul.f32 %v355, %v598
    %v616 = vmul.f32 %v359, %v600
    %v617 = vmul.f32 %v571, %v120
    %v618 = vmul.f32 %v575, %v121
    %v619 = vmul.f32 %v571, %v122
    %v620 = vmul.f32 %v575, %v123
    %v621 = vmul.f32 %v571, %v124
    %v622 = vmul.f32 %v575, %v125
    %v623 = vmul.f32 %v571, %v126
    %v624 = vmul.f32 %v575, %v127
    %633 = vrot.lane.b32.xlu0 %v609, 64
    %v634 = vpop.permute.xlu0 %633
    %635 = vrot.lane.b32.xlu0 %v610, 64
    %v636 = vpop.permute.xlu0 %635
    %637 = vrot.lane.b32.xlu0 %v611, 64
    %v638 = vpop.permute.xlu0 %637
    %639 = vrot.lane.b32.xlu0 %v612, 64
    %v640 = vpop.permute.xlu0 %639
    %641 = vrot.lane.b32.xlu0 %v613, 64
    %v642 = vpop.permute.xlu0 %641
    %643 = vrot.lane.b32.xlu0 %v614, 64
    %v644 = vpop.permute.xlu0 %643
    %645 = vrot.lane.b32.xlu0 %v615, 64
    %v646 = vpop.permute.xlu0 %645
    %647 = vrot.lane.b32.xlu0 %v616, 64
    %v648 = vpop.permute.xlu0 %647
    %vm649 = vcmask 523264
    %v651 = vsel %vm649, %v355, 0
    %v654 = vsel %vm649, %v359, 0
    %v656 = vsel %vm649, %v634, 0
    %v658 = vsel %vm649, %v636, 0
    %v660 = vsel %vm649, %v638, 0
    %v662 = vsel %vm649, %v640, 0
    %v664 = vsel %vm649, %v642, 0
    %v666 = vsel %vm649, %v644, 0
    %v668 = vsel %vm649, %v646, 0
    %v670 = vsel %vm649, %v648, 0
    %672 = vmatpush.xpose.msra.mxu0 0.0
    %673 = vmatpush.xpose.msra.mxu0 0.0
    %674 = vmatpush.xpose.msra.mxu0 0.0
    %675 = vmatpush.xpose.msra.mxu0 0.0
    %676 = vmatpush.xpose.msra.mxu0 0.0
    %677 = vmatpush.xpose.msra.mxu0 0.0
    %678 = vmatpush.xpose.msra.mxu0 0.0
    %679 = vmatpush.xpose.msra.mxu0 0.0
    %v680 = vand.u32 %v670, 4294901760
    %681 = vmatpush.xpose.msra.mxu0 %v680
    %v682 = vand.u32 %v668, 4294901760
    %683 = vmatpush.xpose.msra.mxu0 %v682
    %v684 = vand.u32 %v666, 4294901760
    %685 = vmatpush.xpose.msra.mxu0 %v684
    %v686 = vand.u32 %v664, 4294901760
    %687 = vmatpush.xpose.msra.mxu0 %v686
    %v688 = vand.u32 %v662, 4294901760
    %689 = vmatpush.xpose.msra.mxu0 %v688
    %v690 = vand.u32 %v660, 4294901760
    %691 = vmatpush.xpose.msra.mxu0 %v690
    %v692 = vand.u32 %v658, 4294901760
    %693 = vmatpush.xpose.msra.mxu0 %v692
    %v694 = vand.u32 %v656, 4294901760
    %695 = vmatpush.xpose.msra.mxu0 %v694
    %v696 = vand.u32 %v651, 4294901760
    %v697 = vsub.f32 %v651, %v696
    %v698 = vand.u32 %v697, 4294901760
    %v699 = vsub.f32 %v697, %v698
    %v700 = vand.u32 %v699, 4294901760
    %701 = vmatmul.f32.gmra.mxu0 %v700
    %v702 = vpop.f32.mrf.mxu0
    %v703 = vadd.f32 0.0, %v702
    %v704 = vand.u32 %v654, 4294901760
    %v705 = vsub.f32 %v654, %v704
    %v706 = vand.u32 %v705, 4294901760
    %v707 = vsub.f32 %v705, %v706
    %v708 = vand.u32 %v707, 4294901760
    %709 = vmatmul.f32.gmra.mxu0 %v708
    %v710 = vpop.f32.mrf.mxu0
    %v711 = vadd.f32 0.0, %v710
    %712 = vdwg.mxu0
    %713 = vmatpush.xpose.msra.mxu0 0.0
    %714 = vmatpush.xpose.msra.mxu0 0.0
    %715 = vmatpush.xpose.msra.mxu0 0.0
    %716 = vmatpush.xpose.msra.mxu0 0.0
    %717 = vmatpush.xpose.msra.mxu0 0.0
    %718 = vmatpush.xpose.msra.mxu0 0.0
    %719 = vmatpush.xpose.msra.mxu0 0.0
    %720 = vmatpush.xpose.msra.mxu0 0.0
    %v721 = vand.u32 %v670, 4294901760
    %v722 = vsub.f32 %v670, %v721
    %v723 = vand.u32 %v722, 4294901760
    %v724 = vsub.f32 %v722, %v723
    %v725 = vand.u32 %v724, 4294901760
    %726 = vmatpush.xpose.msra.mxu0 %v725
    %v727 = vand.u32 %v668, 4294901760
    %v728 = vsub.f32 %v668, %v727
    %v729 = vand.u32 %v728, 4294901760
    %v730 = vsub.f32 %v728, %v729
    %v731 = vand.u32 %v730, 4294901760
    %732 = vmatpush.xpose.msra.mxu0 %v731
    %v733 = vand.u32 %v666, 4294901760
    %v734 = vsub.f32 %v666, %v733
    %v735 = vand.u32 %v734, 4294901760
    %v736 = vsub.f32 %v734, %v735
    %v737 = vand.u32 %v736, 4294901760
    %738 = vmatpush.xpose.msra.mxu0 %v737
    %v739 = vand.u32 %v664, 4294901760
    %v740 = vsub.f32 %v664, %v739
    %v741 = vand.u32 %v740, 4294901760
    %v742 = vsub.f32 %v740, %v741
    %v743 = vand.u32 %v742, 4294901760
    %744 = vmatpush.xpose.msra.mxu0 %v743
    %v745 = vand.u32 %v662, 4294901760
    %v746 = vsub.f32 %v662, %v745
    %v747 = vand.u32 %v746, 4294901760
    %v748 = vsub.f32 %v746, %v747
    %v749 = vand.u32 %v748, 4294901760
    %750 = vmatpush.xpose.msra.mxu0 %v749
    %v751 = vand.u32 %v660, 4294901760
    %v752 = vsub.f32 %v660, %v751
    %v753 = vand.u32 %v752, 4294901760
    %v754 = vsub.f32 %v752, %v753
    %v755 = vand.u32 %v754, 4294901760
    %756 = vmatpush.xpose.msra.mxu0 %v755
    %v757 = vand.u32 %v658, 4294901760
    %v758 = vsub.f32 %v658, %v757
    %v759 = vand.u32 %v758, 4294901760
    %v760 = vsub.f32 %v758, %v759
    %v761 = vand.u32 %v760, 4294901760
    %762 = vmatpush.xpose.msra.mxu0 %v761
    %v763 = vand.u32 %v656, 4294901760
    %v764 = vsub.f32 %v656, %v763
    %v765 = vand.u32 %v764, 4294901760
    %v766 = vsub.f32 %v764, %v765
    %v767 = vand.u32 %v766, 4294901760
    %768 = vmatpush.xpose.msra.mxu0 %v767
    %v769 = vand.u32 %v651, 4294901760
    %770 = vmatmul.f32.gmra.mxu0 %v769
    %v771 = vpop.f32.mrf.mxu0
    %v772 = vadd.f32 %v703, %v771
    %v773 = vand.u32 %v654, 4294901760
    %774 = vmatmul.f32.gmra.mxu0 %v773
    %v775 = vpop.f32.mrf.mxu0
    %v776 = vadd.f32 %v711, %v775
    %777 = vdwg.mxu0
    %778 = vmatpush.xpose.msra.mxu0 0.0
    %779 = vmatpush.xpose.msra.mxu0 0.0
    %780 = vmatpush.xpose.msra.mxu0 0.0
    %781 = vmatpush.xpose.msra.mxu0 0.0
    %782 = vmatpush.xpose.msra.mxu0 0.0
    %783 = vmatpush.xpose.msra.mxu0 0.0
    %784 = vmatpush.xpose.msra.mxu0 0.0
    %785 = vmatpush.xpose.msra.mxu0 0.0
    %v786 = vand.u32 %v670, 4294901760
    %v787 = vsub.f32 %v670, %v786
    %788 = vmatpush.xpose.msra.mxu0 %v787
    %v789 = vand.u32 %v668, 4294901760
    %v790 = vsub.f32 %v668, %v789
    %791 = vmatpush.xpose.msra.mxu0 %v790
    %v792 = vand.u32 %v666, 4294901760
    %v793 = vsub.f32 %v666, %v792
    %794 = vmatpush.xpose.msra.mxu0 %v793
    %v795 = vand.u32 %v664, 4294901760
    %v796 = vsub.f32 %v664, %v795
    %797 = vmatpush.xpose.msra.mxu0 %v796
    %v798 = vand.u32 %v662, 4294901760
    %v799 = vsub.f32 %v662, %v798
    %800 = vmatpush.xpose.msra.mxu0 %v799
    %v801 = vand.u32 %v660, 4294901760
    %v802 = vsub.f32 %v660, %v801
    %803 = vmatpush.xpose.msra.mxu0 %v802
    %v804 = vand.u32 %v658, 4294901760
    %v805 = vsub.f32 %v658, %v804
    %806 = vmatpush.xpose.msra.mxu0 %v805
    %v807 = vand.u32 %v656, 4294901760
    %v808 = vsub.f32 %v656, %v807
    %809 = vmatpush.xpose.msra.mxu0 %v808
    %v810 = vand.u32 %v651, 4294901760
    %v811 = vsub.f32 %v651, %v810
    %812 = vmatmul.f32.gmra.mxu0 %v811
    %v813 = vpop.f32.mrf.mxu0
    %v814 = vadd.f32 %v772, %v813
    %v815 = vand.u32 %v654, 4294901760
    %v816 = vsub.f32 %v654, %v815
    %817 = vmatmul.f32.gmra.mxu0 %v816
    %v818 = vpop.f32.mrf.mxu0
    %v819 = vadd.f32 %v776, %v818
    %820 = vdwg.mxu0
    %821 = vmatpush.xpose.msra.mxu0 0.0
    %822 = vmatpush.xpose.msra.mxu0 0.0
    %823 = vmatpush.xpose.msra.mxu0 0.0
    %824 = vmatpush.xpose.msra.mxu0 0.0
    %825 = vmatpush.xpose.msra.mxu0 0.0
    %826 = vmatpush.xpose.msra.mxu0 0.0
    %827 = vmatpush.xpose.msra.mxu0 0.0
    %828 = vmatpush.xpose.msra.mxu0 0.0
    %v829 = vand.u32 %v670, 4294901760
    %830 = vmatpush.xpose.msra.mxu0 %v829
    %v831 = vand.u32 %v668, 4294901760
    %832 = vmatpush.xpose.msra.mxu0 %v831
    %v833 = vand.u32 %v666, 4294901760
    %834 = vmatpush.xpose.msra.mxu0 %v833
    %v835 = vand.u32 %v664, 4294901760
    %836 = vmatpush.xpose.msra.mxu0 %v835
    %v837 = vand.u32 %v662, 4294901760
    %838 = vmatpush.xpose.msra.mxu0 %v837
    %v839 = vand.u32 %v660, 4294901760
    %840 = vmatpush.xpose.msra.mxu0 %v839
    %v841 = vand.u32 %v658, 4294901760
    %842 = vmatpush.xpose.msra.mxu0 %v841
    %v843 = vand.u32 %v656, 4294901760
    %844 = vmatpush.xpose.msra.mxu0 %v843
    %v845 = vand.u32 %v651, 4294901760
    %v846 = vsub.f32 %v651, %v845
    %v847 = vand.u32 %v846, 4294901760
    %848 = vmatmul.f32.gmra.mxu0 %v847
    %v849 = vpop.f32.mrf.mxu0
    %v850 = vadd.f32 %v814, %v849
    %v851 = vand.u32 %v654, 4294901760
    %v852 = vsub.f32 %v654, %v851
    %v853 = vand.u32 %v852, 4294901760
    %854 = vmatmul.f32.gmra.mxu0 %v853
    %v855 = vpop.f32.mrf.mxu0
    %v856 = vadd.f32 %v819, %v855
    %857 = vdwg.mxu0
    %858 = vmatpush.xpose.msra.mxu0 0.0
    %859 = vmatpush.xpose.msra.mxu0 0.0
    %860 = vmatpush.xpose.msra.mxu0 0.0
    %861 = vmatpush.xpose.msra.mxu0 0.0
    %862 = vmatpush.xpose.msra.mxu0 0.0
    %863 = vmatpush.xpose.msra.mxu0 0.0
    %864 = vmatpush.xpose.msra.mxu0 0.0
    %865 = vmatpush.xpose.msra.mxu0 0.0
    %v866 = vand.u32 %v670, 4294901760
    %v867 = vsub.f32 %v670, %v866
    %v868 = vand.u32 %v867, 4294901760
    %869 = vmatpush.xpose.msra.mxu0 %v868
    %v870 = vand.u32 %v668, 4294901760
    %v871 = vsub.f32 %v668, %v870
    %v872 = vand.u32 %v871, 4294901760
    %873 = vmatpush.xpose.msra.mxu0 %v872
    %v874 = vand.u32 %v666, 4294901760
    %v875 = vsub.f32 %v666, %v874
    %v876 = vand.u32 %v875, 4294901760
    %877 = vmatpush.xpose.msra.mxu0 %v876
    %v878 = vand.u32 %v664, 4294901760
    %v879 = vsub.f32 %v664, %v878
    %v880 = vand.u32 %v879, 4294901760
    %881 = vmatpush.xpose.msra.mxu0 %v880
    %v882 = vand.u32 %v662, 4294901760
    %v883 = vsub.f32 %v662, %v882
    %v884 = vand.u32 %v883, 4294901760
    %885 = vmatpush.xpose.msra.mxu0 %v884
    %v886 = vand.u32 %v660, 4294901760
    %v887 = vsub.f32 %v660, %v886
    %v888 = vand.u32 %v887, 4294901760
    %889 = vmatpush.xpose.msra.mxu0 %v888
    %v890 = vand.u32 %v658, 4294901760
    %v891 = vsub.f32 %v658, %v890
    %v892 = vand.u32 %v891, 4294901760
    %893 = vmatpush.xpose.msra.mxu0 %v892
    %v894 = vand.u32 %v656, 4294901760
    %v895 = vsub.f32 %v656, %v894
    %v896 = vand.u32 %v895, 4294901760
    %897 = vmatpush.xpose.msra.mxu0 %v896
    %v898 = vand.u32 %v651, 4294901760
    %899 = vmatmul.f32.gmra.mxu0 %v898
    %v900 = vpop.f32.mrf.mxu0
    %v901 = vadd.f32 %v850, %v900
    %v902 = vand.u32 %v654, 4294901760
    %903 = vmatmul.f32.gmra.mxu0 %v902
    %v904 = vpop.f32.mrf.mxu0
    %v905 = vadd.f32 %v856, %v904
    %906 = vdwg.mxu0
    %907 = vmatpush.xpose.msra.mxu0 0.0
    %908 = vmatpush.xpose.msra.mxu0 0.0
    %909 = vmatpush.xpose.msra.mxu0 0.0
    %910 = vmatpush.xpose.msra.mxu0 0.0
    %911 = vmatpush.xpose.msra.mxu0 0.0
    %912 = vmatpush.xpose.msra.mxu0 0.0
    %913 = vmatpush.xpose.msra.mxu0 0.0
    %914 = vmatpush.xpose.msra.mxu0 0.0
    %v915 = vand.u32 %v670, 4294901760
    %916 = vmatpush.xpose.msra.mxu0 %v915
    %v917 = vand.u32 %v668, 4294901760
    %918 = vmatpush.xpose.msra.mxu0 %v917
    %v919 = vand.u32 %v666, 4294901760
    %920 = vmatpush.xpose.msra.mxu0 %v919
    %v921 = vand.u32 %v664, 4294901760
    %922 = vmatpush.xpose.msra.mxu0 %v921
    %v923 = vand.u32 %v662, 4294901760
    %924 = vmatpush.xpose.msra.mxu0 %v923
    %v925 = vand.u32 %v660, 4294901760
    %926 = vmatpush.xpose.msra.mxu0 %v925
    %v927 = vand.u32 %v658, 4294901760
    %928 = vmatpush.xpose.msra.mxu0 %v927
    %v929 = vand.u32 %v656, 4294901760
    %930 = vmatpush.xpose.msra.mxu0 %v929
    %v931 = vand.u32 %v651, 4294901760
    %932 = vmatmul.f32.gmra.mxu0 %v931
    %v933 = vpop.f32.mrf.mxu0
    %v934 = vadd.f32 %v901, %v933
    %v935 = vand.u32 %v654, 4294901760
    %936 = vmatmul.f32.gmra.mxu0 %v935
    %v937 = vpop.f32.mrf.mxu0
    %v938 = vadd.f32 %v905, %v937
    %939 = vdwg.mxu0
    %v940 = vmul.f32 %v934, 0.25
    %v941 = vmul.f32 %v938, 0.25
    %vm942 = vcmp.gt.f32.partialorder %v128, 0.5
    %vm943 = vcmp.gt.f32.partialorder %v129, 0.5
    %v944 = vsel %vm942, %v940, -1e+30
    %v945 = vsel %vm943, %v941, -1e+30
    %vm946 = vcmask 130048
    %v947 = vsel %vm946, %v944, -inf
    %948 = vmax.xlane.f32.xlu0 %v947
    %v949 = vpop.xlane.xlu0 %948
    %v950 = vsel %vm946, %v945, -inf
    %951 = vmax.xlane.f32.xlu0 %v950
    %v952 = vpop.xlane.xlu0 %951
    %vm953 = vcmask 261248
    %v954 = vsel %vm953, %v944, -inf
    %955 = vmax.xlane.f32.xlu0 %v954
    %v956 = vpop.xlane.xlu0 %955
    %v957 = vsel %vm953, %v945, -inf
    %958 = vmax.xlane.f32.xlu0 %v957
    %v959 = vpop.xlane.xlu0 %958
    %vm960 = vcmask 392448
    %v961 = vsel %vm960, %v944, -inf
    %962 = vmax.xlane.f32.xlu0 %v961
    %v963 = vpop.xlane.xlu0 %962
    %v964 = vsel %vm960, %v945, -inf
    %965 = vmax.xlane.f32.xlu0 %v964
    %v966 = vpop.xlane.xlu0 %965
    %vm967 = vcmask 523648
    %v968 = vsel %vm967, %v944, -inf
    %969 = vmax.xlane.f32.xlu0 %v968
    %v970 = vpop.xlane.xlu0 %969
    %v971 = vsel %vm967, %v945, -inf
    %972 = vmax.xlane.f32.xlu0 %v971
    %v973 = vpop.xlane.xlu0 %972
    %vm974 = vcmask 7168
    %v975 = vsel %vm974, %v949, %v956
    %v976 = vsel %vm974, %v952, %v959
    %vm977 = vcmask 15360
    %v978 = vsel %vm977, %v975, %v963
    %v979 = vsel %vm977, %v976, %v966
    %vm980 = vcmask 23552
    %v981 = vsel %vm980, %v978, %v970
    %v982 = vsel %vm980, %v979, %v973
    %v983 = vld [vmem:[#allocation5] sm:$0xf]
    %vm984 = vcmask 31744
    %v986 = vsel %vm984, %v981, 0
    %v989 = vsel %vm984, %v982, 0
    %vm991 = vcmask 1043456
    %v993 = vsel %vm991, %v983, 0
    %995 = vmatpush.msra.mxu0 0.0
    %996 = vmatpush.msra.mxu0 0.0
    %997 = vmatpush.msra.mxu0 0.0
    %998 = vmatpush.msra.mxu0 0.0
    %999 = vmatpush.msra.mxu0 0.0
    %1000 = vmatpush.msra.mxu0 0.0
    %1001 = vmatpush.msra.mxu0 0.0
    %1002 = vmatpush.msra.mxu0 0.0
    %1003 = vmatpush.msra.mxu0 0.0
    %1004 = vmatpush.msra.mxu0 0.0
    %1005 = vmatpush.msra.mxu0 0.0
    %1006 = vmatpush.msra.mxu0 0.0
    %1007 = vmatpush.msra.mxu0 0.0
    %1008 = vmatpush.msra.mxu0 0.0
    %1009 = vmatpush.msra.mxu0 0.0
    %v1010 = vand.u32 %v993, 4294901760
    %1011 = vmatpush.msra.mxu0 %v1010
    %v1012 = vand.u32 %v986, 4294901760
    %v1013 = vsub.f32 %v986, %v1012
    %v1014 = vand.u32 %v1013, 4294901760
    %v1015 = vsub.f32 %v1013, %v1014
    %v1016 = vand.u32 %v1015, 4294901760
    %1017 = vmatmul.f32.gmra.mxu0 %v1016
    %v1018 = vpop.f32.mrf.mxu0
    %v1019 = vadd.f32 0.0, %v1018
    %v1020 = vand.u32 %v989, 4294901760
    %v1021 = vsub.f32 %v989, %v1020
    %v1022 = vand.u32 %v1021, 4294901760
    %v1023 = vsub.f32 %v1021, %v1022
    %v1024 = vand.u32 %v1023, 4294901760
    %1025 = vmatmul.f32.gmra.mxu0 %v1024
    %v1026 = vpop.f32.mrf.mxu0
    %v1027 = vadd.f32 0.0, %v1026
    %1028 = vdwg.mxu0
    %1029 = vmatpush.msra.mxu0 0.0
    %1030 = vmatpush.msra.mxu0 0.0
    %1031 = vmatpush.msra.mxu0 0.0
    %1032 = vmatpush.msra.mxu0 0.0
    %1033 = vmatpush.msra.mxu0 0.0
    %1034 = vmatpush.msra.mxu0 0.0
    %1035 = vmatpush.msra.mxu0 0.0
    %1036 = vmatpush.msra.mxu0 0.0
    %1037 = vmatpush.msra.mxu0 0.0
    %1038 = vmatpush.msra.mxu0 0.0
    %1039 = vmatpush.msra.mxu0 0.0
    %1040 = vmatpush.msra.mxu0 0.0
    %1041 = vmatpush.msra.mxu0 0.0
    %1042 = vmatpush.msra.mxu0 0.0
    %1043 = vmatpush.msra.mxu0 0.0
    %v1044 = vand.u32 %v993, 4294901760
    %v1045 = vsub.f32 %v993, %v1044
    %v1046 = vand.u32 %v1045, 4294901760
    %v1047 = vsub.f32 %v1045, %v1046
    %v1048 = vand.u32 %v1047, 4294901760
    %1049 = vmatpush.msra.mxu0 %v1048
    %v1050 = vand.u32 %v986, 4294901760
    %1051 = vmatmul.f32.gmra.mxu0 %v1050
    %v1052 = vpop.f32.mrf.mxu0
    %v1053 = vadd.f32 %v1019, %v1052
    %v1054 = vand.u32 %v989, 4294901760
    %1055 = vmatmul.f32.gmra.mxu0 %v1054
    %v1056 = vpop.f32.mrf.mxu0
    %v1057 = vadd.f32 %v1027, %v1056
    %1058 = vdwg.mxu0
    %1059 = vmatpush.msra.mxu0 0.0
    %1060 = vmatpush.msra.mxu0 0.0
    %1061 = vmatpush.msra.mxu0 0.0
    %1062 = vmatpush.msra.mxu0 0.0
    %1063 = vmatpush.msra.mxu0 0.0
    %1064 = vmatpush.msra.mxu0 0.0
    %1065 = vmatpush.msra.mxu0 0.0
    %1066 = vmatpush.msra.mxu0 0.0
    %1067 = vmatpush.msra.mxu0 0.0
    %1068 = vmatpush.msra.mxu0 0.0
    %1069 = vmatpush.msra.mxu0 0.0
    %1070 = vmatpush.msra.mxu0 0.0
    %1071 = vmatpush.msra.mxu0 0.0
    %1072 = vmatpush.msra.mxu0 0.0
    %1073 = vmatpush.msra.mxu0 0.0
    %v1074 = vand.u32 %v993, 4294901760
    %v1075 = vsub.f32 %v993, %v1074
    %1076 = vmatpush.msra.mxu0 %v1075
    %v1077 = vand.u32 %v986, 4294901760
    %v1078 = vsub.f32 %v986, %v1077
    %1079 = vmatmul.f32.gmra.mxu0 %v1078
    %v1080 = vpop.f32.mrf.mxu0
    %v1081 = vadd.f32 %v1053, %v1080
    %v1082 = vand.u32 %v989, 4294901760
    %v1083 = vsub.f32 %v989, %v1082
    %1084 = vmatmul.f32.gmra.mxu0 %v1083
    %v1085 = vpop.f32.mrf.mxu0
    %v1086 = vadd.f32 %v1057, %v1085
    %1087 = vdwg.mxu0
    %1088 = vmatpush.msra.mxu0 0.0
    %1089 = vmatpush.msra.mxu0 0.0
    %1090 = vmatpush.msra.mxu0 0.0
    %1091 = vmatpush.msra.mxu0 0.0
    %1092 = vmatpush.msra.mxu0 0.0
    %1093 = vmatpush.msra.mxu0 0.0
    %1094 = vmatpush.msra.mxu0 0.0
    %1095 = vmatpush.msra.mxu0 0.0
    %1096 = vmatpush.msra.mxu0 0.0
    %1097 = vmatpush.msra.mxu0 0.0
    %1098 = vmatpush.msra.mxu0 0.0
    %1099 = vmatpush.msra.mxu0 0.0
    %1100 = vmatpush.msra.mxu0 0.0
    %1101 = vmatpush.msra.mxu0 0.0
    %1102 = vmatpush.msra.mxu0 0.0
    %v1103 = vand.u32 %v993, 4294901760
    %1104 = vmatpush.msra.mxu0 %v1103
    %v1105 = vand.u32 %v986, 4294901760
    %v1106 = vsub.f32 %v986, %v1105
    %v1107 = vand.u32 %v1106, 4294901760
    %1108 = vmatmul.f32.gmra.mxu0 %v1107
    %v1109 = vpop.f32.mrf.mxu0
    %v1110 = vadd.f32 %v1081, %v1109
    %v1111 = vand.u32 %v989, 4294901760
    %v1112 = vsub.f32 %v989, %v1111
    %v1113 = vand.u32 %v1112, 4294901760
    %1114 = vmatmul.f32.gmra.mxu0 %v1113
    %v1115 = vpop.f32.mrf.mxu0
    %v1116 = vadd.f32 %v1086, %v1115
    %1117 = vdwg.mxu0
    %1118 = vmatpush.msra.mxu0 0.0
    %1119 = vmatpush.msra.mxu0 0.0
    %1120 = vmatpush.msra.mxu0 0.0
    %1121 = vmatpush.msra.mxu0 0.0
    %1122 = vmatpush.msra.mxu0 0.0
    %1123 = vmatpush.msra.mxu0 0.0
    %1124 = vmatpush.msra.mxu0 0.0
    %1125 = vmatpush.msra.mxu0 0.0
    %1126 = vmatpush.msra.mxu0 0.0
    %1127 = vmatpush.msra.mxu0 0.0
    %1128 = vmatpush.msra.mxu0 0.0
    %1129 = vmatpush.msra.mxu0 0.0
    %1130 = vmatpush.msra.mxu0 0.0
    %1131 = vmatpush.msra.mxu0 0.0
    %1132 = vmatpush.msra.mxu0 0.0
    %v1133 = vand.u32 %v993, 4294901760
    %v1134 = vsub.f32 %v993, %v1133
    %v1135 = vand.u32 %v1134, 4294901760
    %1136 = vmatpush.msra.mxu0 %v1135
    %v1137 = vand.u32 %v986, 4294901760
    %1138 = vmatmul.f32.gmra.mxu0 %v1137
    %v1139 = vpop.f32.mrf.mxu0
    %v1140 = vadd.f32 %v1110, %v1139
    %v1141 = vand.u32 %v989, 4294901760
    %1142 = vmatmul.f32.gmra.mxu0 %v1141
    %v1143 = vpop.f32.mrf.mxu0
    %v1144 = vadd.f32 %v1116, %v1143
    %1145 = vdwg.mxu0
    %1146 = vmatpush.msra.mxu0 0.0
    %1147 = vmatpush.msra.mxu0 0.0
    %1148 = vmatpush.msra.mxu0 0.0
    %1149 = vmatpush.msra.mxu0 0.0
    %1150 = vmatpush.msra.mxu0 0.0
    %1151 = vmatpush.msra.mxu0 0.0
    %1152 = vmatpush.msra.mxu0 0.0
    %1153 = vmatpush.msra.mxu0 0.0
    %1154 = vmatpush.msra.mxu0 0.0
    %1155 = vmatpush.msra.mxu0 0.0
    %1156 = vmatpush.msra.mxu0 0.0
    %1157 = vmatpush.msra.mxu0 0.0
    %1158 = vmatpush.msra.mxu0 0.0
    %1159 = vmatpush.msra.mxu0 0.0
    %1160 = vmatpush.msra.mxu0 0.0
    %v1161 = vand.u32 %v993, 4294901760
    %1162 = vmatpush.msra.mxu0 %v1161
    %v1163 = vand.u32 %v986, 4294901760
    %1164 = vmatmul.f32.gmra.mxu0 %v1163
    %v1165 = vpop.f32.mrf.mxu0
    %v1166 = vadd.f32 %v1140, %v1165
    %v1167 = vand.u32 %v989, 4294901760
    %1168 = vmatmul.f32.gmra.mxu0 %v1167
    %v1169 = vpop.f32.mrf.mxu0
    %v1170 = vadd.f32 %v1144, %v1169
    %1171 = vdwg.mxu0
    %v1172 = vsub.f32 %v944, %v1166
    %v1173 = vsub.f32 %v945, %v1170
    %v1174 = vmul.f32 %v1172, 1.442695
    %v1175 = vpow.pop %v1174
    %v1176 = vmul.f32 %v1173, 1.442695
    %v1177 = vpow.pop %v1176
    %v1178 = vld [vmem:[#allocation7] sm:$0xff]
    %v1179 = vld [vmem:[#allocation7 + $0x8] sm:$0xff]
    %v1180 = vld [vmem:[#allocation7 + $0x10] sm:$0xff]
    %v1181 = vld [vmem:[#allocation7 + $0x18] sm:$0xff]
    %v1182 = vld [vmem:[#allocation7 + $0x20] sm:$0xff]
    %v1183 = vld [vmem:[#allocation7 + $0x28] sm:$0xff]
    %v1184 = vld [vmem:[#allocation7 + $0x30] sm:$0xff]
    %v1185 = vld [vmem:[#allocation7 + $0x38] sm:$0xff]
    %v1187 = vsel %vm649, %v1175, 0
    %v1190 = vsel %vm649, %v1177, 0
    %1192 = vmatpush.msra.mxu0 0.0
    %1193 = vmatpush.msra.mxu0 0.0
    %1194 = vmatpush.msra.mxu0 0.0
    %1195 = vmatpush.msra.mxu0 0.0
    %1196 = vmatpush.msra.mxu0 0.0
    %1197 = vmatpush.msra.mxu0 0.0
    %1198 = vmatpush.msra.mxu0 0.0
    %1199 = vmatpush.msra.mxu0 0.0
    %v1200 = vand.u32 %v1185, 4294901760
    %1201 = vmatpush.msra.mxu0 %v1200
    %v1202 = vand.u32 %v1184, 4294901760
    %1203 = vmatpush.msra.mxu0 %v1202
    %v1204 = vand.u32 %v1183, 4294901760
    %1205 = vmatpush.msra.mxu0 %v1204
    %v1206 = vand.u32 %v1182, 4294901760
    %1207 = vmatpush.msra.mxu0 %v1206
    %v1208 = vand.u32 %v1181, 4294901760
    %1209 = vmatpush.msra.mxu0 %v1208
    %v1210 = vand.u32 %v1180, 4294901760
    %1211 = vmatpush.msra.mxu0 %v1210
    %v1212 = vand.u32 %v1179, 4294901760
    %1213 = vmatpush.msra.mxu0 %v1212
    %v1214 = vand.u32 %v1178, 4294901760
    %1215 = vmatpush.msra.mxu0 %v1214
    %v1216 = vand.u32 %v1187, 4294901760
    %v1217 = vsub.f32 %v1187, %v1216
    %v1218 = vand.u32 %v1217, 4294901760
    %v1219 = vsub.f32 %v1217, %v1218
    %v1220 = vand.u32 %v1219, 4294901760
    %1221 = vmatmul.f32.gmra.mxu0 %v1220
    %v1222 = vpop.f32.mrf.mxu0
    %v1223 = vadd.f32 0.0, %v1222
    %v1224 = vand.u32 %v1190, 4294901760
    %v1225 = vsub.f32 %v1190, %v1224
    %v1226 = vand.u32 %v1225, 4294901760
    %v1227 = vsub.f32 %v1225, %v1226
    %v1228 = vand.u32 %v1227, 4294901760
    %1229 = vmatmul.f32.gmra.mxu0 %v1228
    %v1230 = vpop.f32.mrf.mxu0
    %v1231 = vadd.f32 0.0, %v1230
    %1232 = vdwg.mxu0
    %1233 = vmatpush.msra.mxu0 0.0
    %1234 = vmatpush.msra.mxu0 0.0
    %1235 = vmatpush.msra.mxu0 0.0
    %1236 = vmatpush.msra.mxu0 0.0
    %1237 = vmatpush.msra.mxu0 0.0
    %1238 = vmatpush.msra.mxu0 0.0
    %1239 = vmatpush.msra.mxu0 0.0
    %1240 = vmatpush.msra.mxu0 0.0
    %v1241 = vand.u32 %v1185, 4294901760
    %v1242 = vsub.f32 %v1185, %v1241
    %v1243 = vand.u32 %v1242, 4294901760
    %v1244 = vsub.f32 %v1242, %v1243
    %v1245 = vand.u32 %v1244, 4294901760
    %1246 = vmatpush.msra.mxu0 %v1245
    %v1247 = vand.u32 %v1184, 4294901760
    %v1248 = vsub.f32 %v1184, %v1247
    %v1249 = vand.u32 %v1248, 4294901760
    %v1250 = vsub.f32 %v1248, %v1249
    %v1251 = vand.u32 %v1250, 4294901760
    %1252 = vmatpush.msra.mxu0 %v1251
    %v1253 = vand.u32 %v1183, 4294901760
    %v1254 = vsub.f32 %v1183, %v1253
    %v1255 = vand.u32 %v1254, 4294901760
    %v1256 = vsub.f32 %v1254, %v1255
    %v1257 = vand.u32 %v1256, 4294901760
    %1258 = vmatpush.msra.mxu0 %v1257
    %v1259 = vand.u32 %v1182, 4294901760
    %v1260 = vsub.f32 %v1182, %v1259
    %v1261 = vand.u32 %v1260, 4294901760
    %v1262 = vsub.f32 %v1260, %v1261
    %v1263 = vand.u32 %v1262, 4294901760
    %1264 = vmatpush.msra.mxu0 %v1263
    %v1265 = vand.u32 %v1181, 4294901760
    %v1266 = vsub.f32 %v1181, %v1265
    %v1267 = vand.u32 %v1266, 4294901760
    %v1268 = vsub.f32 %v1266, %v1267
    %v1269 = vand.u32 %v1268, 4294901760
    %1270 = vmatpush.msra.mxu0 %v1269
    %v1271 = vand.u32 %v1180, 4294901760
    %v1272 = vsub.f32 %v1180, %v1271
    %v1273 = vand.u32 %v1272, 4294901760
    %v1274 = vsub.f32 %v1272, %v1273
    %v1275 = vand.u32 %v1274, 4294901760
    %1276 = vmatpush.msra.mxu0 %v1275
    %v1277 = vand.u32 %v1179, 4294901760
    %v1278 = vsub.f32 %v1179, %v1277
    %v1279 = vand.u32 %v1278, 4294901760
    %v1280 = vsub.f32 %v1278, %v1279
    %v1281 = vand.u32 %v1280, 4294901760
    %1282 = vmatpush.msra.mxu0 %v1281
    %v1283 = vand.u32 %v1178, 4294901760
    %v1284 = vsub.f32 %v1178, %v1283
    %v1285 = vand.u32 %v1284, 4294901760
    %v1286 = vsub.f32 %v1284, %v1285
    %v1287 = vand.u32 %v1286, 4294901760
    %1288 = vmatpush.msra.mxu0 %v1287
    %v1289 = vand.u32 %v1187, 4294901760
    %1290 = vmatmul.f32.gmra.mxu0 %v1289
    %v1291 = vpop.f32.mrf.mxu0
    %v1292 = vadd.f32 %v1223, %v1291
    %v1293 = vand.u32 %v1190, 4294901760
    %1294 = vmatmul.f32.gmra.mxu0 %v1293
    %v1295 = vpop.f32.mrf.mxu0
    %v1296 = vadd.f32 %v1231, %v1295
    %1297 = vdwg.mxu0
    %1298 = vmatpush.msra.mxu0 0.0
    %1299 = vmatpush.msra.mxu0 0.0
    %1300 = vmatpush.msra.mxu0 0.0
    %1301 = vmatpush.msra.mxu0 0.0
    %1302 = vmatpush.msra.mxu0 0.0
    %1303 = vmatpush.msra.mxu0 0.0
    %1304 = vmatpush.msra.mxu0 0.0
    %1305 = vmatpush.msra.mxu0 0.0
    %v1306 = vand.u32 %v1185, 4294901760
    %v1307 = vsub.f32 %v1185, %v1306
    %1308 = vmatpush.msra.mxu0 %v1307
    %v1309 = vand.u32 %v1184, 4294901760
    %v1310 = vsub.f32 %v1184, %v1309
    %1311 = vmatpush.msra.mxu0 %v1310
    %v1312 = vand.u32 %v1183, 4294901760
    %v1313 = vsub.f32 %v1183, %v1312
    %1314 = vmatpush.msra.mxu0 %v1313
    %v1315 = vand.u32 %v1182, 4294901760
    %v1316 = vsub.f32 %v1182, %v1315
    %1317 = vmatpush.msra.mxu0 %v1316
    %v1318 = vand.u32 %v1181, 4294901760
    %v1319 = vsub.f32 %v1181, %v1318
    %1320 = vmatpush.msra.mxu0 %v1319
    %v1321 = vand.u32 %v1180, 4294901760
    %v1322 = vsub.f32 %v1180, %v1321
    %1323 = vmatpush.msra.mxu0 %v1322
    %v1324 = vand.u32 %v1179, 4294901760
    %v1325 = vsub.f32 %v1179, %v1324
    %1326 = vmatpush.msra.mxu0 %v1325
    %v1327 = vand.u32 %v1178, 4294901760
    %v1328 = vsub.f32 %v1178, %v1327
    %1329 = vmatpush.msra.mxu0 %v1328
    %v1330 = vand.u32 %v1187, 4294901760
    %v1331 = vsub.f32 %v1187, %v1330
    %1332 = vmatmul.f32.gmra.mxu0 %v1331
    %v1333 = vpop.f32.mrf.mxu0
    %v1334 = vadd.f32 %v1292, %v1333
    %v1335 = vand.u32 %v1190, 4294901760
    %v1336 = vsub.f32 %v1190, %v1335
    %1337 = vmatmul.f32.gmra.mxu0 %v1336
    %v1338 = vpop.f32.mrf.mxu0
    %v1339 = vadd.f32 %v1296, %v1338
    %1340 = vdwg.mxu0
    %1341 = vmatpush.msra.mxu0 0.0
    %1342 = vmatpush.msra.mxu0 0.0
    %1343 = vmatpush.msra.mxu0 0.0
    %1344 = vmatpush.msra.mxu0 0.0
    %1345 = vmatpush.msra.mxu0 0.0
    %1346 = vmatpush.msra.mxu0 0.0
    %1347 = vmatpush.msra.mxu0 0.0
    %1348 = vmatpush.msra.mxu0 0.0
    %v1349 = vand.u32 %v1185, 4294901760
    %1350 = vmatpush.msra.mxu0 %v1349
    %v1351 = vand.u32 %v1184, 4294901760
    %1352 = vmatpush.msra.mxu0 %v1351
    %v1353 = vand.u32 %v1183, 4294901760
    %1354 = vmatpush.msra.mxu0 %v1353
    %v1355 = vand.u32 %v1182, 4294901760
    %1356 = vmatpush.msra.mxu0 %v1355
    %v1357 = vand.u32 %v1181, 4294901760
    %1358 = vmatpush.msra.mxu0 %v1357
    %v1359 = vand.u32 %v1180, 4294901760
    %1360 = vmatpush.msra.mxu0 %v1359
    %v1361 = vand.u32 %v1179, 4294901760
    %1362 = vmatpush.msra.mxu0 %v1361
    %v1363 = vand.u32 %v1178, 4294901760
    %1364 = vmatpush.msra.mxu0 %v1363
    %v1365 = vand.u32 %v1187, 4294901760
    %v1366 = vsub.f32 %v1187, %v1365
    %v1367 = vand.u32 %v1366, 4294901760
    %1368 = vmatmul.f32.gmra.mxu0 %v1367
    %v1369 = vpop.f32.mrf.mxu0
    %v1370 = vadd.f32 %v1334, %v1369
    %v1371 = vand.u32 %v1190, 4294901760
    %v1372 = vsub.f32 %v1190, %v1371
    %v1373 = vand.u32 %v1372, 4294901760
    %1374 = vmatmul.f32.gmra.mxu0 %v1373
    %v1375 = vpop.f32.mrf.mxu0
    %v1376 = vadd.f32 %v1339, %v1375
    %1377 = vdwg.mxu0
    %1378 = vmatpush.msra.mxu0 0.0
    %1379 = vmatpush.msra.mxu0 0.0
    %1380 = vmatpush.msra.mxu0 0.0
    %1381 = vmatpush.msra.mxu0 0.0
    %1382 = vmatpush.msra.mxu0 0.0
    %1383 = vmatpush.msra.mxu0 0.0
    %1384 = vmatpush.msra.mxu0 0.0
    %1385 = vmatpush.msra.mxu0 0.0
    %v1386 = vand.u32 %v1185, 4294901760
    %v1387 = vsub.f32 %v1185, %v1386
    %v1388 = vand.u32 %v1387, 4294901760
    %1389 = vmatpush.msra.mxu0 %v1388
    %v1390 = vand.u32 %v1184, 4294901760
    %v1391 = vsub.f32 %v1184, %v1390
    %v1392 = vand.u32 %v1391, 4294901760
    %1393 = vmatpush.msra.mxu0 %v1392
    %v1394 = vand.u32 %v1183, 4294901760
    %v1395 = vsub.f32 %v1183, %v1394
    %v1396 = vand.u32 %v1395, 4294901760
    %1397 = vmatpush.msra.mxu0 %v1396
    %v1398 = vand.u32 %v1182, 4294901760
    %v1399 = vsub.f32 %v1182, %v1398
    %v1400 = vand.u32 %v1399, 4294901760
    %1401 = vmatpush.msra.mxu0 %v1400
    %v1402 = vand.u32 %v1181, 4294901760
    %v1403 = vsub.f32 %v1181, %v1402
    %v1404 = vand.u32 %v1403, 4294901760
    %1405 = vmatpush.msra.mxu0 %v1404
    %v1406 = vand.u32 %v1180, 4294901760
    %v1407 = vsub.f32 %v1180, %v1406
    %v1408 = vand.u32 %v1407, 4294901760
    %1409 = vmatpush.msra.mxu0 %v1408
    %v1410 = vand.u32 %v1179, 4294901760
    %v1411 = vsub.f32 %v1179, %v1410
    %v1412 = vand.u32 %v1411, 4294901760
    %1413 = vmatpush.msra.mxu0 %v1412
    %v1414 = vand.u32 %v1178, 4294901760
    %v1415 = vsub.f32 %v1178, %v1414
    %v1416 = vand.u32 %v1415, 4294901760
    %1417 = vmatpush.msra.mxu0 %v1416
    %v1418 = vand.u32 %v1187, 4294901760
    %1419 = vmatmul.f32.gmra.mxu0 %v1418
    %v1420 = vpop.f32.mrf.mxu0
    %v1421 = vadd.f32 %v1370, %v1420
    %v1422 = vand.u32 %v1190, 4294901760
    %1423 = vmatmul.f32.gmra.mxu0 %v1422
    %v1424 = vpop.f32.mrf.mxu0
    %v1425 = vadd.f32 %v1376, %v1424
    %1426 = vdwg.mxu0
    %1427 = vmatpush.msra.mxu0 0.0
    %1428 = vmatpush.msra.mxu0 0.0
    %1429 = vmatpush.msra.mxu0 0.0
    %1430 = vmatpush.msra.mxu0 0.0
    %1431 = vmatpush.msra.mxu0 0.0
    %1432 = vmatpush.msra.mxu0 0.0
    %1433 = vmatpush.msra.mxu0 0.0
    %1434 = vmatpush.msra.mxu0 0.0
    %v1435 = vand.u32 %v1185, 4294901760
    %1436 = vmatpush.msra.mxu0 %v1435
    %v1437 = vand.u32 %v1184, 4294901760
    %1438 = vmatpush.msra.mxu0 %v1437
    %v1439 = vand.u32 %v1183, 4294901760
    %1440 = vmatpush.msra.mxu0 %v1439
    %v1441 = vand.u32 %v1182, 4294901760
    %1442 = vmatpush.msra.mxu0 %v1441
    %v1443 = vand.u32 %v1181, 4294901760
    %1444 = vmatpush.msra.mxu0 %v1443
    %v1445 = vand.u32 %v1180, 4294901760
    %1446 = vmatpush.msra.mxu0 %v1445
    %v1447 = vand.u32 %v1179, 4294901760
    %1448 = vmatpush.msra.mxu0 %v1447
    %v1449 = vand.u32 %v1178, 4294901760
    %1450 = vmatpush.msra.mxu0 %v1449
    %v1451 = vand.u32 %v1187, 4294901760
    %1452 = vmatmul.f32.gmra.mxu0 %v1451
    %v1453 = vpop.f32.mrf.mxu0
    %v1454 = vadd.f32 %v1421, %v1453
    %v1455 = vand.u32 %v1190, 4294901760
    %1456 = vmatmul.f32.gmra.mxu0 %v1455
    %v1457 = vpop.f32.mrf.mxu0
    %v1458 = vadd.f32 %v1425, %v1457
    %1459 = vdwg.mxu0
    %v1460 = vrcp.pop %v1454
    %v1461 = vmul.f32 %v1454, %v1460
    %v1462 = vsub.f32 1.0, %v1461
    %v1463 = vmul.f32 %v1460, %v1462
    %v1464 = vadd.f32 %v1460, %v1463
    %vm1465 = vweird.f32 %v1454
    %vm1466 = vweird.f32 %v1460
    %vm1467 = vmor %vm1465, %vm1466
    %v1468 = vsel %vm1467, %v1460, %v1464
    %v1469 = vand.u32 2147483647, %v1454
    %vm1470 = vcmp.eq.f32.partialorder %v1469, 8.507059e+37
    %v1471 = vand.u32 %v1454, 2147483648
    %v1472 = vor.u32 1.1754944e-38, %v1471
    %v1473 = vsel %vm1470, %v1472, %v1468
    %v1474 = vrcp.pop %v1458
    %v1475 = vmul.f32 %v1458, %v1474
    %v1476 = vsub.f32 1.0, %v1475
    %v1477 = vmul.f32 %v1474, %v1476
    %v1478 = vadd.f32 %v1474, %v1477
    %vm1479 = vweird.f32 %v1458
    %vm1480 = vweird.f32 %v1474
    %vm1481 = vmor %vm1479, %vm1480
    %v1482 = vsel %vm1481, %v1474, %v1478
    %v1483 = vand.u32 2147483647, %v1458
    %vm1484 = vcmp.eq.f32.partialorder %v1483, 8.507059e+37
    %v1485 = vand.u32 %v1458, 2147483648
    %v1486 = vor.u32 1.1754944e-38, %v1485
    %v1487 = vsel %vm1484, %v1486, %v1482
    %v1488 = vmul.f32 %v1175, %v1473
    %v1489 = vmul.f32 %v1177, %v1487
    %v1490 = vld [vmem:[#allocation8] sm:$0xff]
    %v1491 = vld [vmem:[#allocation8 + $0x8] sm:$0xff]
    %v1492 = vld [vmem:[#allocation8 + $0x10] sm:$0xff]
    %v1493 = vld [vmem:[#allocation8 + $0x18] sm:$0xff]
    %v1494 = vld [vmem:[#allocation8 + $0x20] sm:$0xff]
    %v1495 = vld [vmem:[#allocation8 + $0x28] sm:$0xff]
    %v1496 = vld [vmem:[#allocation8 + $0x30] sm:$0xff]
    %v1497 = vld [vmem:[#allocation8 + $0x38] sm:$0xff]
    %v1499 = vsel %vm649, %v1488, 0
    %v1502 = vsel %vm649, %v1489, 0
    %1504 = vmatpush.msra.mxu0 0.0
    %1505 = vmatpush.msra.mxu0 0.0
    %1506 = vmatpush.msra.mxu0 0.0
    %1507 = vmatpush.msra.mxu0 0.0
    %1508 = vmatpush.msra.mxu0 0.0
    %1509 = vmatpush.msra.mxu0 0.0
    %1510 = vmatpush.msra.mxu0 0.0
    %1511 = vmatpush.msra.mxu0 0.0
    %v1512 = vand.u32 %v1497, 4294901760
    %1513 = vmatpush.msra.mxu0 %v1512
    %v1514 = vand.u32 %v1496, 4294901760
    %1515 = vmatpush.msra.mxu0 %v1514
    %v1516 = vand.u32 %v1495, 4294901760
    %1517 = vmatpush.msra.mxu0 %v1516
    %v1518 = vand.u32 %v1494, 4294901760
    %1519 = vmatpush.msra.mxu0 %v1518
    %v1520 = vand.u32 %v1493, 4294901760
    %1521 = vmatpush.msra.mxu0 %v1520
    %v1522 = vand.u32 %v1492, 4294901760
    %1523 = vmatpush.msra.mxu0 %v1522
    %v1524 = vand.u32 %v1491, 4294901760
    %1525 = vmatpush.msra.mxu0 %v1524
    %v1526 = vand.u32 %v1490, 4294901760
    %1527 = vmatpush.msra.mxu0 %v1526
    %v1528 = vand.u32 %v1499, 4294901760
    %v1529 = vsub.f32 %v1499, %v1528
    %v1530 = vand.u32 %v1529, 4294901760
    %v1531 = vsub.f32 %v1529, %v1530
    %v1532 = vand.u32 %v1531, 4294901760
    %1533 = vmatmul.f32.gmra.mxu0 %v1532
    %v1534 = vpop.f32.mrf.mxu0
    %v1535 = vadd.f32 0.0, %v1534
    %v1536 = vand.u32 %v1502, 4294901760
    %v1537 = vsub.f32 %v1502, %v1536
    %v1538 = vand.u32 %v1537, 4294901760
    %v1539 = vsub.f32 %v1537, %v1538
    %v1540 = vand.u32 %v1539, 4294901760
    %1541 = vmatmul.f32.gmra.mxu0 %v1540
    %v1542 = vpop.f32.mrf.mxu0
    %v1543 = vadd.f32 0.0, %v1542
    %1544 = vdwg.mxu0
    %1545 = vmatpush.msra.mxu0 0.0
    %1546 = vmatpush.msra.mxu0 0.0
    %1547 = vmatpush.msra.mxu0 0.0
    %1548 = vmatpush.msra.mxu0 0.0
    %1549 = vmatpush.msra.mxu0 0.0
    %1550 = vmatpush.msra.mxu0 0.0
    %1551 = vmatpush.msra.mxu0 0.0
    %1552 = vmatpush.msra.mxu0 0.0
    %v1553 = vand.u32 %v1497, 4294901760
    %v1554 = vsub.f32 %v1497, %v1553
    %v1555 = vand.u32 %v1554, 4294901760
    %v1556 = vsub.f32 %v1554, %v1555
    %v1557 = vand.u32 %v1556, 4294901760
    %1558 = vmatpush.msra.mxu0 %v1557
    %v1559 = vand.u32 %v1496, 4294901760
    %v1560 = vsub.f32 %v1496, %v1559
    %v1561 = vand.u32 %v1560, 4294901760
    %v1562 = vsub.f32 %v1560, %v1561
    %v1563 = vand.u32 %v1562, 4294901760
    %1564 = vmatpush.msra.mxu0 %v1563
    %v1565 = vand.u32 %v1495, 4294901760
    %v1566 = vsub.f32 %v1495, %v1565
    %v1567 = vand.u32 %v1566, 4294901760
    %v1568 = vsub.f32 %v1566, %v1567
    %v1569 = vand.u32 %v1568, 4294901760
    %1570 = vmatpush.msra.mxu0 %v1569
    %v1571 = vand.u32 %v1494, 4294901760
    %v1572 = vsub.f32 %v1494, %v1571
    %v1573 = vand.u32 %v1572, 4294901760
    %v1574 = vsub.f32 %v1572, %v1573
    %v1575 = vand.u32 %v1574, 4294901760
    %1576 = vmatpush.msra.mxu0 %v1575
    %v1577 = vand.u32 %v1493, 4294901760
    %v1578 = vsub.f32 %v1493, %v1577
    %v1579 = vand.u32 %v1578, 4294901760
    %v1580 = vsub.f32 %v1578, %v1579
    %v1581 = vand.u32 %v1580, 4294901760
    %1582 = vmatpush.msra.mxu0 %v1581
    %v1583 = vand.u32 %v1492, 4294901760
    %v1584 = vsub.f32 %v1492, %v1583
    %v1585 = vand.u32 %v1584, 4294901760
    %v1586 = vsub.f32 %v1584, %v1585
    %v1587 = vand.u32 %v1586, 4294901760
    %1588 = vmatpush.msra.mxu0 %v1587
    %v1589 = vand.u32 %v1491, 4294901760
    %v1590 = vsub.f32 %v1491, %v1589
    %v1591 = vand.u32 %v1590, 4294901760
    %v1592 = vsub.f32 %v1590, %v1591
    %v1593 = vand.u32 %v1592, 4294901760
    %1594 = vmatpush.msra.mxu0 %v1593
    %v1595 = vand.u32 %v1490, 4294901760
    %v1596 = vsub.f32 %v1490, %v1595
    %v1597 = vand.u32 %v1596, 4294901760
    %v1598 = vsub.f32 %v1596, %v1597
    %v1599 = vand.u32 %v1598, 4294901760
    %1600 = vmatpush.msra.mxu0 %v1599
    %v1601 = vand.u32 %v1499, 4294901760
    %1602 = vmatmul.f32.gmra.mxu0 %v1601
    %v1603 = vpop.f32.mrf.mxu0
    %v1604 = vadd.f32 %v1535, %v1603
    %v1605 = vand.u32 %v1502, 4294901760
    %1606 = vmatmul.f32.gmra.mxu0 %v1605
    %v1607 = vpop.f32.mrf.mxu0
    %v1608 = vadd.f32 %v1543, %v1607
    %1609 = vdwg.mxu0
    %1610 = vmatpush.msra.mxu0 0.0
    %1611 = vmatpush.msra.mxu0 0.0
    %1612 = vmatpush.msra.mxu0 0.0
    %1613 = vmatpush.msra.mxu0 0.0
    %1614 = vmatpush.msra.mxu0 0.0
    %1615 = vmatpush.msra.mxu0 0.0
    %1616 = vmatpush.msra.mxu0 0.0
    %1617 = vmatpush.msra.mxu0 0.0
    %v1618 = vand.u32 %v1497, 4294901760
    %v1619 = vsub.f32 %v1497, %v1618
    %1620 = vmatpush.msra.mxu0 %v1619
    %v1621 = vand.u32 %v1496, 4294901760
    %v1622 = vsub.f32 %v1496, %v1621
    %1623 = vmatpush.msra.mxu0 %v1622
    %v1624 = vand.u32 %v1495, 4294901760
    %v1625 = vsub.f32 %v1495, %v1624
    %1626 = vmatpush.msra.mxu0 %v1625
    %v1627 = vand.u32 %v1494, 4294901760
    %v1628 = vsub.f32 %v1494, %v1627
    %1629 = vmatpush.msra.mxu0 %v1628
    %v1630 = vand.u32 %v1493, 4294901760
    %v1631 = vsub.f32 %v1493, %v1630
    %1632 = vmatpush.msra.mxu0 %v1631
    %v1633 = vand.u32 %v1492, 4294901760
    %v1634 = vsub.f32 %v1492, %v1633
    %1635 = vmatpush.msra.mxu0 %v1634
    %v1636 = vand.u32 %v1491, 4294901760
    %v1637 = vsub.f32 %v1491, %v1636
    %1638 = vmatpush.msra.mxu0 %v1637
    %v1639 = vand.u32 %v1490, 4294901760
    %v1640 = vsub.f32 %v1490, %v1639
    %1641 = vmatpush.msra.mxu0 %v1640
    %v1642 = vand.u32 %v1499, 4294901760
    %v1643 = vsub.f32 %v1499, %v1642
    %1644 = vmatmul.f32.gmra.mxu0 %v1643
    %v1645 = vpop.f32.mrf.mxu0
    %v1646 = vadd.f32 %v1604, %v1645
    %v1647 = vand.u32 %v1502, 4294901760
    %v1648 = vsub.f32 %v1502, %v1647
    %1649 = vmatmul.f32.gmra.mxu0 %v1648
    %v1650 = vpop.f32.mrf.mxu0
    %v1651 = vadd.f32 %v1608, %v1650
    %1652 = vdwg.mxu0
    %1653 = vmatpush.msra.mxu0 0.0
    %1654 = vmatpush.msra.mxu0 0.0
    %1655 = vmatpush.msra.mxu0 0.0
    %1656 = vmatpush.msra.mxu0 0.0
    %1657 = vmatpush.msra.mxu0 0.0
    %1658 = vmatpush.msra.mxu0 0.0
    %1659 = vmatpush.msra.mxu0 0.0
    %1660 = vmatpush.msra.mxu0 0.0
    %v1661 = vand.u32 %v1497, 4294901760
    %1662 = vmatpush.msra.mxu0 %v1661
    %v1663 = vand.u32 %v1496, 4294901760
    %1664 = vmatpush.msra.mxu0 %v1663
    %v1665 = vand.u32 %v1495, 4294901760
    %1666 = vmatpush.msra.mxu0 %v1665
    %v1667 = vand.u32 %v1494, 4294901760
    %1668 = vmatpush.msra.mxu0 %v1667
    %v1669 = vand.u32 %v1493, 4294901760
    %1670 = vmatpush.msra.mxu0 %v1669
    %v1671 = vand.u32 %v1492, 4294901760
    %1672 = vmatpush.msra.mxu0 %v1671
    %v1673 = vand.u32 %v1491, 4294901760
    %1674 = vmatpush.msra.mxu0 %v1673
    %v1675 = vand.u32 %v1490, 4294901760
    %1676 = vmatpush.msra.mxu0 %v1675
    %v1677 = vand.u32 %v1499, 4294901760
    %v1678 = vsub.f32 %v1499, %v1677
    %v1679 = vand.u32 %v1678, 4294901760
    %1680 = vmatmul.f32.gmra.mxu0 %v1679
    %v1681 = vpop.f32.mrf.mxu0
    %v1682 = vadd.f32 %v1646, %v1681
    %v1683 = vand.u32 %v1502, 4294901760
    %v1684 = vsub.f32 %v1502, %v1683
    %v1685 = vand.u32 %v1684, 4294901760
    %1686 = vmatmul.f32.gmra.mxu0 %v1685
    %v1687 = vpop.f32.mrf.mxu0
    %v1688 = vadd.f32 %v1651, %v1687
    %1689 = vdwg.mxu0
    %1690 = vmatpush.msra.mxu0 0.0
    %1691 = vmatpush.msra.mxu0 0.0
    %1692 = vmatpush.msra.mxu0 0.0
    %1693 = vmatpush.msra.mxu0 0.0
    %1694 = vmatpush.msra.mxu0 0.0
    %1695 = vmatpush.msra.mxu0 0.0
    %1696 = vmatpush.msra.mxu0 0.0
    %1697 = vmatpush.msra.mxu0 0.0
    %v1698 = vand.u32 %v1497, 4294901760
    %v1699 = vsub.f32 %v1497, %v1698
    %v1700 = vand.u32 %v1699, 4294901760
    %1701 = vmatpush.msra.mxu0 %v1700
    %v1702 = vand.u32 %v1496, 4294901760
    %v1703 = vsub.f32 %v1496, %v1702
    %v1704 = vand.u32 %v1703, 4294901760
    %1705 = vmatpush.msra.mxu0 %v1704
    %v1706 = vand.u32 %v1495, 4294901760
    %v1707 = vsub.f32 %v1495, %v1706
    %v1708 = vand.u32 %v1707, 4294901760
    %1709 = vmatpush.msra.mxu0 %v1708
    %v1710 = vand.u32 %v1494, 4294901760
    %v1711 = vsub.f32 %v1494, %v1710
    %v1712 = vand.u32 %v1711, 4294901760
    %1713 = vmatpush.msra.mxu0 %v1712
    %v1714 = vand.u32 %v1493, 4294901760
    %v1715 = vsub.f32 %v1493, %v1714
    %v1716 = vand.u32 %v1715, 4294901760
    %1717 = vmatpush.msra.mxu0 %v1716
    %v1718 = vand.u32 %v1492, 4294901760
    %v1719 = vsub.f32 %v1492, %v1718
    %v1720 = vand.u32 %v1719, 4294901760
    %1721 = vmatpush.msra.mxu0 %v1720
    %v1722 = vand.u32 %v1491, 4294901760
    %v1723 = vsub.f32 %v1491, %v1722
    %v1724 = vand.u32 %v1723, 4294901760
    %1725 = vmatpush.msra.mxu0 %v1724
    %v1726 = vand.u32 %v1490, 4294901760
    %v1727 = vsub.f32 %v1490, %v1726
    %v1728 = vand.u32 %v1727, 4294901760
    %1729 = vmatpush.msra.mxu0 %v1728
    %v1730 = vand.u32 %v1499, 4294901760
    %1731 = vmatmul.f32.gmra.mxu0 %v1730
    %v1732 = vpop.f32.mrf.mxu0
    %v1733 = vadd.f32 %v1682, %v1732
    %v1734 = vand.u32 %v1502, 4294901760
    %1735 = vmatmul.f32.gmra.mxu0 %v1734
    %v1736 = vpop.f32.mrf.mxu0
    %v1737 = vadd.f32 %v1688, %v1736
    %1738 = vdwg.mxu0
    %1739 = vmatpush.msra.mxu0 0.0
    %1740 = vmatpush.msra.mxu0 0.0
    %1741 = vmatpush.msra.mxu0 0.0
    %1742 = vmatpush.msra.mxu0 0.0
    %1743 = vmatpush.msra.mxu0 0.0
    %1744 = vmatpush.msra.mxu0 0.0
    %1745 = vmatpush.msra.mxu0 0.0
    %1746 = vmatpush.msra.mxu0 0.0
    %v1747 = vand.u32 %v1497, 4294901760
    %1748 = vmatpush.msra.mxu0 %v1747
    %v1749 = vand.u32 %v1496, 4294901760
    %1750 = vmatpush.msra.mxu0 %v1749
    %v1751 = vand.u32 %v1495, 4294901760
    %1752 = vmatpush.msra.mxu0 %v1751
    %v1753 = vand.u32 %v1494, 4294901760
    %1754 = vmatpush.msra.mxu0 %v1753
    %v1755 = vand.u32 %v1493, 4294901760
    %1756 = vmatpush.msra.mxu0 %v1755
    %v1757 = vand.u32 %v1492, 4294901760
    %1758 = vmatpush.msra.mxu0 %v1757
    %v1759 = vand.u32 %v1491, 4294901760
    %1760 = vmatpush.msra.mxu0 %v1759
    %v1761 = vand.u32 %v1490, 4294901760
    %1762 = vmatpush.msra.mxu0 %v1761
    %v1763 = vand.u32 %v1499, 4294901760
    %1764 = vmatmul.f32.gmra.mxu0 %v1763
    %v1765 = vpop.f32.mrf.mxu0
    %v1766 = vadd.f32 %v1733, %v1765
    %v1767 = vand.u32 %v1502, 4294901760
    %1768 = vmatmul.f32.gmra.mxu0 %v1767
    %v1769 = vpop.f32.mrf.mxu0
    %v1770 = vadd.f32 %v1737, %v1769
    %1771 = vdwg.mxu0
    %v1772 = vld [vmem:[#allocation10] sm:$0xff]
    %v1773 = vld [vmem:[#allocation10 + $0x8] sm:$0xff]
    %v1774 = vld [vmem:[#allocation10 + $0x10] sm:$0xff]
    %v1775 = vld [vmem:[#allocation10 + $0x18] sm:$0xff]
    %v1776 = vld [vmem:[#allocation10 + $0x20] sm:$0xff]
    %v1777 = vld [vmem:[#allocation10 + $0x28] sm:$0xff]
    %v1778 = vld [vmem:[#allocation10 + $0x30] sm:$0xff]
    %v1779 = vld [vmem:[#allocation10 + $0x38] sm:$0xff]
    %v1781 = vsel %vm649, %v1766, 0
    %v1784 = vsel %vm649, %v1770, 0
    %1786 = vmatpush.msra.mxu0 0.0
    %1787 = vmatpush.msra.mxu0 0.0
    %1788 = vmatpush.msra.mxu0 0.0
    %1789 = vmatpush.msra.mxu0 0.0
    %1790 = vmatpush.msra.mxu0 0.0
    %1791 = vmatpush.msra.mxu0 0.0
    %1792 = vmatpush.msra.mxu0 0.0
    %1793 = vmatpush.msra.mxu0 0.0
    %v1794 = vand.u32 %v1779, 4294901760
    %1795 = vmatpush.msra.mxu0 %v1794
    %v1796 = vand.u32 %v1778, 4294901760
    %1797 = vmatpush.msra.mxu0 %v1796
    %v1798 = vand.u32 %v1777, 4294901760
    %1799 = vmatpush.msra.mxu0 %v1798
    %v1800 = vand.u32 %v1776, 4294901760
    %1801 = vmatpush.msra.mxu0 %v1800
    %v1802 = vand.u32 %v1775, 4294901760
    %1803 = vmatpush.msra.mxu0 %v1802
    %v1804 = vand.u32 %v1774, 4294901760
    %1805 = vmatpush.msra.mxu0 %v1804
    %v1806 = vand.u32 %v1773, 4294901760
    %1807 = vmatpush.msra.mxu0 %v1806
    %v1808 = vand.u32 %v1772, 4294901760
    %1809 = vmatpush.msra.mxu0 %v1808
    %v1810 = vand.u32 %v1781, 4294901760
    %v1811 = vsub.f32 %v1781, %v1810
    %v1812 = vand.u32 %v1811, 4294901760
    %v1813 = vsub.f32 %v1811, %v1812
    %v1814 = vand.u32 %v1813, 4294901760
    %1815 = vmatmul.f32.gmra.mxu0 %v1814
    %v1816 = vpop.f32.mrf.mxu0
    %v1817 = vadd.f32 0.0, %v1816
    %v1818 = vand.u32 %v1784, 4294901760
    %v1819 = vsub.f32 %v1784, %v1818
    %v1820 = vand.u32 %v1819, 4294901760
    %v1821 = vsub.f32 %v1819, %v1820
    %v1822 = vand.u32 %v1821, 4294901760
    %1823 = vmatmul.f32.gmra.mxu0 %v1822
    %v1824 = vpop.f32.mrf.mxu0
    %v1825 = vadd.f32 0.0, %v1824
    %1826 = vdwg.mxu0
    %1827 = vmatpush.msra.mxu0 0.0
    %1828 = vmatpush.msra.mxu0 0.0
    %1829 = vmatpush.msra.mxu0 0.0
    %1830 = vmatpush.msra.mxu0 0.0
    %1831 = vmatpush.msra.mxu0 0.0
    %1832 = vmatpush.msra.mxu0 0.0
    %1833 = vmatpush.msra.mxu0 0.0
    %1834 = vmatpush.msra.mxu0 0.0
    %v1835 = vand.u32 %v1779, 4294901760
    %v1836 = vsub.f32 %v1779, %v1835
    %v1837 = vand.u32 %v1836, 4294901760
    %v1838 = vsub.f32 %v1836, %v1837
    %v1839 = vand.u32 %v1838, 4294901760
    %1840 = vmatpush.msra.mxu0 %v1839
    %v1841 = vand.u32 %v1778, 4294901760
    %v1842 = vsub.f32 %v1778, %v1841
    %v1843 = vand.u32 %v1842, 4294901760
    %v1844 = vsub.f32 %v1842, %v1843
    %v1845 = vand.u32 %v1844, 4294901760
    %1846 = vmatpush.msra.mxu0 %v1845
    %v1847 = vand.u32 %v1777, 4294901760
    %v1848 = vsub.f32 %v1777, %v1847
    %v1849 = vand.u32 %v1848, 4294901760
    %v1850 = vsub.f32 %v1848, %v1849
    %v1851 = vand.u32 %v1850, 4294901760
    %1852 = vmatpush.msra.mxu0 %v1851
    %v1853 = vand.u32 %v1776, 4294901760
    %v1854 = vsub.f32 %v1776, %v1853
    %v1855 = vand.u32 %v1854, 4294901760
    %v1856 = vsub.f32 %v1854, %v1855
    %v1857 = vand.u32 %v1856, 4294901760
    %1858 = vmatpush.msra.mxu0 %v1857
    %v1859 = vand.u32 %v1775, 4294901760
    %v1860 = vsub.f32 %v1775, %v1859
    %v1861 = vand.u32 %v1860, 4294901760
    %v1862 = vsub.f32 %v1860, %v1861
    %v1863 = vand.u32 %v1862, 4294901760
    %1864 = vmatpush.msra.mxu0 %v1863
    %v1865 = vand.u32 %v1774, 4294901760
    %v1866 = vsub.f32 %v1774, %v1865
    %v1867 = vand.u32 %v1866, 4294901760
    %v1868 = vsub.f32 %v1866, %v1867
    %v1869 = vand.u32 %v1868, 4294901760
    %1870 = vmatpush.msra.mxu0 %v1869
    %v1871 = vand.u32 %v1773, 4294901760
    %v1872 = vsub.f32 %v1773, %v1871
    %v1873 = vand.u32 %v1872, 4294901760
    %v1874 = vsub.f32 %v1872, %v1873
    %v1875 = vand.u32 %v1874, 4294901760
    %1876 = vmatpush.msra.mxu0 %v1875
    %v1877 = vand.u32 %v1772, 4294901760
    %v1878 = vsub.f32 %v1772, %v1877
    %v1879 = vand.u32 %v1878, 4294901760
    %v1880 = vsub.f32 %v1878, %v1879
    %v1881 = vand.u32 %v1880, 4294901760
    %1882 = vmatpush.msra.mxu0 %v1881
    %v1883 = vand.u32 %v1781, 4294901760
    %1884 = vmatmul.f32.gmra.mxu0 %v1883
    %v1885 = vpop.f32.mrf.mxu0
    %v1886 = vadd.f32 %v1817, %v1885
    %v1887 = vand.u32 %v1784, 4294901760
    %1888 = vmatmul.f32.gmra.mxu0 %v1887
    %v1889 = vpop.f32.mrf.mxu0
    %v1890 = vadd.f32 %v1825, %v1889
    %1891 = vdwg.mxu0
    %1892 = vmatpush.msra.mxu0 0.0
    %1893 = vmatpush.msra.mxu0 0.0
    %1894 = vmatpush.msra.mxu0 0.0
    %1895 = vmatpush.msra.mxu0 0.0
    %1896 = vmatpush.msra.mxu0 0.0
    %1897 = vmatpush.msra.mxu0 0.0
    %1898 = vmatpush.msra.mxu0 0.0
    %1899 = vmatpush.msra.mxu0 0.0
    %v1900 = vand.u32 %v1779, 4294901760
    %v1901 = vsub.f32 %v1779, %v1900
    %1902 = vmatpush.msra.mxu0 %v1901
    %v1903 = vand.u32 %v1778, 4294901760
    %v1904 = vsub.f32 %v1778, %v1903
    %1905 = vmatpush.msra.mxu0 %v1904
    %v1906 = vand.u32 %v1777, 4294901760
    %v1907 = vsub.f32 %v1777, %v1906
    %1908 = vmatpush.msra.mxu0 %v1907
    %v1909 = vand.u32 %v1776, 4294901760
    %v1910 = vsub.f32 %v1776, %v1909
    %1911 = vmatpush.msra.mxu0 %v1910
    %v1912 = vand.u32 %v1775, 4294901760
    %v1913 = vsub.f32 %v1775, %v1912
    %1914 = vmatpush.msra.mxu0 %v1913
    %v1915 = vand.u32 %v1774, 4294901760
    %v1916 = vsub.f32 %v1774, %v1915
    %1917 = vmatpush.msra.mxu0 %v1916
    %v1918 = vand.u32 %v1773, 4294901760
    %v1919 = vsub.f32 %v1773, %v1918
    %1920 = vmatpush.msra.mxu0 %v1919
    %v1921 = vand.u32 %v1772, 4294901760
    %v1922 = vsub.f32 %v1772, %v1921
    %1923 = vmatpush.msra.mxu0 %v1922
    %v1924 = vand.u32 %v1781, 4294901760
    %v1925 = vsub.f32 %v1781, %v1924
    %1926 = vmatmul.f32.gmra.mxu0 %v1925
    %v1927 = vpop.f32.mrf.mxu0
    %v1928 = vadd.f32 %v1886, %v1927
    %v1929 = vand.u32 %v1784, 4294901760
    %v1930 = vsub.f32 %v1784, %v1929
    %1931 = vmatmul.f32.gmra.mxu0 %v1930
    %v1932 = vpop.f32.mrf.mxu0
    %v1933 = vadd.f32 %v1890, %v1932
    %1934 = vdwg.mxu0
    %1935 = vmatpush.msra.mxu0 0.0
    %1936 = vmatpush.msra.mxu0 0.0
    %1937 = vmatpush.msra.mxu0 0.0
    %1938 = vmatpush.msra.mxu0 0.0
    %1939 = vmatpush.msra.mxu0 0.0
    %1940 = vmatpush.msra.mxu0 0.0
    %1941 = vmatpush.msra.mxu0 0.0
    %1942 = vmatpush.msra.mxu0 0.0
    %v1943 = vand.u32 %v1779, 4294901760
    %1944 = vmatpush.msra.mxu0 %v1943
    %v1945 = vand.u32 %v1778, 4294901760
    %1946 = vmatpush.msra.mxu0 %v1945
    %v1947 = vand.u32 %v1777, 4294901760
    %1948 = vmatpush.msra.mxu0 %v1947
    %v1949 = vand.u32 %v1776, 4294901760
    %1950 = vmatpush.msra.mxu0 %v1949
    %v1951 = vand.u32 %v1775, 4294901760
    %1952 = vmatpush.msra.mxu0 %v1951
    %v1953 = vand.u32 %v1774, 4294901760
    %1954 = vmatpush.msra.mxu0 %v1953
    %v1955 = vand.u32 %v1773, 4294901760
    %1956 = vmatpush.msra.mxu0 %v1955
    %v1957 = vand.u32 %v1772, 4294901760
    %1958 = vmatpush.msra.mxu0 %v1957
    %v1959 = vand.u32 %v1781, 4294901760
    %v1960 = vsub.f32 %v1781, %v1959
    %v1961 = vand.u32 %v1960, 4294901760
    %1962 = vmatmul.f32.gmra.mxu0 %v1961
    %v1963 = vpop.f32.mrf.mxu0
    %v1964 = vadd.f32 %v1928, %v1963
    %v1965 = vand.u32 %v1784, 4294901760
    %v1966 = vsub.f32 %v1784, %v1965
    %v1967 = vand.u32 %v1966, 4294901760
    %1968 = vmatmul.f32.gmra.mxu0 %v1967
    %v1969 = vpop.f32.mrf.mxu0
    %v1970 = vadd.f32 %v1933, %v1969
    %1971 = vdwg.mxu0
    %1972 = vmatpush.msra.mxu0 0.0
    %1973 = vmatpush.msra.mxu0 0.0
    %1974 = vmatpush.msra.mxu0 0.0
    %1975 = vmatpush.msra.mxu0 0.0
    %1976 = vmatpush.msra.mxu0 0.0
    %1977 = vmatpush.msra.mxu0 0.0
    %1978 = vmatpush.msra.mxu0 0.0
    %1979 = vmatpush.msra.mxu0 0.0
    %v1980 = vand.u32 %v1779, 4294901760
    %v1981 = vsub.f32 %v1779, %v1980
    %v1982 = vand.u32 %v1981, 4294901760
    %1983 = vmatpush.msra.mxu0 %v1982
    %v1984 = vand.u32 %v1778, 4294901760
    %v1985 = vsub.f32 %v1778, %v1984
    %v1986 = vand.u32 %v1985, 4294901760
    %1987 = vmatpush.msra.mxu0 %v1986
    %v1988 = vand.u32 %v1777, 4294901760
    %v1989 = vsub.f32 %v1777, %v1988
    %v1990 = vand.u32 %v1989, 4294901760
    %1991 = vmatpush.msra.mxu0 %v1990
    %v1992 = vand.u32 %v1776, 4294901760
    %v1993 = vsub.f32 %v1776, %v1992
    %v1994 = vand.u32 %v1993, 4294901760
    %1995 = vmatpush.msra.mxu0 %v1994
    %v1996 = vand.u32 %v1775, 4294901760
    %v1997 = vsub.f32 %v1775, %v1996
    %v1998 = vand.u32 %v1997, 4294901760
    %1999 = vmatpush.msra.mxu0 %v1998
    %v2000 = vand.u32 %v1774, 4294901760
    %v2001 = vsub.f32 %v1774, %v2000
    %v2002 = vand.u32 %v2001, 4294901760
    %2003 = vmatpush.msra.mxu0 %v2002
    %v2004 = vand.u32 %v1773, 4294901760
    %v2005 = vsub.f32 %v1773, %v2004
    %v2006 = vand.u32 %v2005, 4294901760
    %2007 = vmatpush.msra.mxu0 %v2006
    %v2008 = vand.u32 %v1772, 4294901760
    %v2009 = vsub.f32 %v1772, %v2008
    %v2010 = vand.u32 %v2009, 4294901760
    %2011 = vmatpush.msra.mxu0 %v2010
    %v2012 = vand.u32 %v1781, 4294901760
    %2013 = vmatmul.f32.gmra.mxu0 %v2012
    %v2014 = vpop.f32.mrf.mxu0
    %v2015 = vadd.f32 %v1964, %v2014
    %v2016 = vand.u32 %v1784, 4294901760
    %2017 = vmatmul.f32.gmra.mxu0 %v2016
    %v2018 = vpop.f32.mrf.mxu0
    %v2019 = vadd.f32 %v1970, %v2018
    %2020 = vdwg.mxu0
    %2021 = vmatpush.msra.mxu0 0.0
    %2022 = vmatpush.msra.mxu0 0.0
    %2023 = vmatpush.msra.mxu0 0.0
    %2024 = vmatpush.msra.mxu0 0.0
    %2025 = vmatpush.msra.mxu0 0.0
    %2026 = vmatpush.msra.mxu0 0.0
    %2027 = vmatpush.msra.mxu0 0.0
    %2028 = vmatpush.msra.mxu0 0.0
    %v2029 = vand.u32 %v1779, 4294901760
    %2030 = vmatpush.msra.mxu0 %v2029
    %v2031 = vand.u32 %v1778, 4294901760
    %2032 = vmatpush.msra.mxu0 %v2031
    %v2033 = vand.u32 %v1777, 4294901760
    %2034 = vmatpush.msra.mxu0 %v2033
    %v2035 = vand.u32 %v1776, 4294901760
    %2036 = vmatpush.msra.mxu0 %v2035
    %v2037 = vand.u32 %v1775, 4294901760
    %2038 = vmatpush.msra.mxu0 %v2037
    %v2039 = vand.u32 %v1774, 4294901760
    %2040 = vmatpush.msra.mxu0 %v2039
    %v2041 = vand.u32 %v1773, 4294901760
    %2042 = vmatpush.msra.mxu0 %v2041
    %v2043 = vand.u32 %v1772, 4294901760
    %2044 = vmatpush.msra.mxu0 %v2043
    %v2045 = vand.u32 %v1781, 4294901760
    %2046 = vmatmul.f32.gmra.mxu0 %v2045
    %v2047 = vpop.f32.mrf.mxu0
    %v2048 = vadd.f32 %v2015, %v2047
    %v2049 = vand.u32 %v1784, 4294901760
    %2050 = vmatmul.f32.gmra.mxu0 %v2049
    %v2051 = vpop.f32.mrf.mxu0
    %v2052 = vadd.f32 %v2019, %v2051
    %2053 = vdwg.mxu0
    %v2054 = vsub.f32 %v1766, %v2048
    %v2055 = vsub.f32 %v1770, %v2052
    %v2056 = vmul.f32 %v2054, %v2054
    %v2057 = vmul.f32 %v2055, %v2055
    %v2059 = vsel %vm649, %v2056, 0
    %v2062 = vsel %vm649, %v2057, 0
    %2064 = vmatpush.msra.mxu0 0.0
    %2065 = vmatpush.msra.mxu0 0.0
    %2066 = vmatpush.msra.mxu0 0.0
    %2067 = vmatpush.msra.mxu0 0.0
    %2068 = vmatpush.msra.mxu0 0.0
    %2069 = vmatpush.msra.mxu0 0.0
    %2070 = vmatpush.msra.mxu0 0.0
    %2071 = vmatpush.msra.mxu0 0.0
    %v2072 = vand.u32 %v1779, 4294901760
    %2073 = vmatpush.msra.mxu0 %v2072
    %v2074 = vand.u32 %v1778, 4294901760
    %2075 = vmatpush.msra.mxu0 %v2074
    %v2076 = vand.u32 %v1777, 4294901760
    %2077 = vmatpush.msra.mxu0 %v2076
    %v2078 = vand.u32 %v1776, 4294901760
    %2079 = vmatpush.msra.mxu0 %v2078
    %v2080 = vand.u32 %v1775, 4294901760
    %2081 = vmatpush.msra.mxu0 %v2080
    %v2082 = vand.u32 %v1774, 4294901760
    %2083 = vmatpush.msra.mxu0 %v2082
    %v2084 = vand.u32 %v1773, 4294901760
    %2085 = vmatpush.msra.mxu0 %v2084
    %v2086 = vand.u32 %v1772, 4294901760
    %2087 = vmatpush.msra.mxu0 %v2086
    %v2088 = vand.u32 %v2059, 4294901760
    %v2089 = vsub.f32 %v2059, %v2088
    %v2090 = vand.u32 %v2089, 4294901760
    %v2091 = vsub.f32 %v2089, %v2090
    %v2092 = vand.u32 %v2091, 4294901760
    %2093 = vmatmul.f32.gmra.mxu0 %v2092
    %v2094 = vpop.f32.mrf.mxu0
    %v2095 = vadd.f32 1e-05, %v2094
    %v2096 = vand.u32 %v2062, 4294901760
    %v2097 = vsub.f32 %v2062, %v2096
    %v2098 = vand.u32 %v2097, 4294901760
    %v2099 = vsub.f32 %v2097, %v2098
    %v2100 = vand.u32 %v2099, 4294901760
    %2101 = vmatmul.f32.gmra.mxu0 %v2100
    %v2102 = vpop.f32.mrf.mxu0
    %v2103 = vadd.f32 1e-05, %v2102
    %2104 = vdwg.mxu0
    %2105 = vmatpush.msra.mxu0 0.0
    %2106 = vmatpush.msra.mxu0 0.0
    %2107 = vmatpush.msra.mxu0 0.0
    %2108 = vmatpush.msra.mxu0 0.0
    %2109 = vmatpush.msra.mxu0 0.0
    %2110 = vmatpush.msra.mxu0 0.0
    %2111 = vmatpush.msra.mxu0 0.0
    %2112 = vmatpush.msra.mxu0 0.0
    %v2113 = vand.u32 %v1779, 4294901760
    %v2114 = vsub.f32 %v1779, %v2113
    %v2115 = vand.u32 %v2114, 4294901760
    %v2116 = vsub.f32 %v2114, %v2115
    %v2117 = vand.u32 %v2116, 4294901760
    %2118 = vmatpush.msra.mxu0 %v2117
    %v2119 = vand.u32 %v1778, 4294901760
    %v2120 = vsub.f32 %v1778, %v2119
    %v2121 = vand.u32 %v2120, 4294901760
    %v2122 = vsub.f32 %v2120, %v2121
    %v2123 = vand.u32 %v2122, 4294901760
    %2124 = vmatpush.msra.mxu0 %v2123
    %v2125 = vand.u32 %v1777, 4294901760
    %v2126 = vsub.f32 %v1777, %v2125
    %v2127 = vand.u32 %v2126, 4294901760
    %v2128 = vsub.f32 %v2126, %v2127
    %v2129 = vand.u32 %v2128, 4294901760
    %2130 = vmatpush.msra.mxu0 %v2129
    %v2131 = vand.u32 %v1776, 4294901760
    %v2132 = vsub.f32 %v1776, %v2131
    %v2133 = vand.u32 %v2132, 4294901760
    %v2134 = vsub.f32 %v2132, %v2133
    %v2135 = vand.u32 %v2134, 4294901760
    %2136 = vmatpush.msra.mxu0 %v2135
    %v2137 = vand.u32 %v1775, 4294901760
    %v2138 = vsub.f32 %v1775, %v2137
    %v2139 = vand.u32 %v2138, 4294901760
    %v2140 = vsub.f32 %v2138, %v2139
    %v2141 = vand.u32 %v2140, 4294901760
    %2142 = vmatpush.msra.mxu0 %v2141
    %v2143 = vand.u32 %v1774, 4294901760
    %v2144 = vsub.f32 %v1774, %v2143
    %v2145 = vand.u32 %v2144, 4294901760
    %v2146 = vsub.f32 %v2144, %v2145
    %v2147 = vand.u32 %v2146, 4294901760
    %2148 = vmatpush.msra.mxu0 %v2147
    %v2149 = vand.u32 %v1773, 4294901760
    %v2150 = vsub.f32 %v1773, %v2149
    %v2151 = vand.u32 %v2150, 4294901760
    %v2152 = vsub.f32 %v2150, %v2151
    %v2153 = vand.u32 %v2152, 4294901760
    %2154 = vmatpush.msra.mxu0 %v2153
    %v2155 = vand.u32 %v1772, 4294901760
    %v2156 = vsub.f32 %v1772, %v2155
    %v2157 = vand.u32 %v2156, 4294901760
    %v2158 = vsub.f32 %v2156, %v2157
    %v2159 = vand.u32 %v2158, 4294901760
    %2160 = vmatpush.msra.mxu0 %v2159
    %v2161 = vand.u32 %v2059, 4294901760
    %2162 = vmatmul.f32.gmra.mxu0 %v2161
    %v2163 = vpop.f32.mrf.mxu0
    %v2164 = vadd.f32 %v2095, %v2163
    %v2165 = vand.u32 %v2062, 4294901760
    %2166 = vmatmul.f32.gmra.mxu0 %v2165
    %v2167 = vpop.f32.mrf.mxu0
    %v2168 = vadd.f32 %v2103, %v2167
    %2169 = vdwg.mxu0
    %2170 = vmatpush.msra.mxu0 0.0
    %2171 = vmatpush.msra.mxu0 0.0
    %2172 = vmatpush.msra.mxu0 0.0
    %2173 = vmatpush.msra.mxu0 0.0
    %2174 = vmatpush.msra.mxu0 0.0
    %2175 = vmatpush.msra.mxu0 0.0
    %2176 = vmatpush.msra.mxu0 0.0
    %2177 = vmatpush.msra.mxu0 0.0
    %v2178 = vand.u32 %v1779, 4294901760
    %v2179 = vsub.f32 %v1779, %v2178
    %2180 = vmatpush.msra.mxu0 %v2179
    %v2181 = vand.u32 %v1778, 4294901760
    %v2182 = vsub.f32 %v1778, %v2181
    %2183 = vmatpush.msra.mxu0 %v2182
    %v2184 = vand.u32 %v1777, 4294901760
    %v2185 = vsub.f32 %v1777, %v2184
    %2186 = vmatpush.msra.mxu0 %v2185
    %v2187 = vand.u32 %v1776, 4294901760
    %v2188 = vsub.f32 %v1776, %v2187
    %2189 = vmatpush.msra.mxu0 %v2188
    %v2190 = vand.u32 %v1775, 4294901760
    %v2191 = vsub.f32 %v1775, %v2190
    %2192 = vmatpush.msra.mxu0 %v2191
    %v2193 = vand.u32 %v1774, 4294901760
    %v2194 = vsub.f32 %v1774, %v2193
    %2195 = vmatpush.msra.mxu0 %v2194
    %v2196 = vand.u32 %v1773, 4294901760
    %v2197 = vsub.f32 %v1773, %v2196
    %2198 = vmatpush.msra.mxu0 %v2197
    %v2199 = vand.u32 %v1772, 4294901760
    %v2200 = vsub.f32 %v1772, %v2199
    %2201 = vmatpush.msra.mxu0 %v2200
    %v2202 = vand.u32 %v2059, 4294901760
    %v2203 = vsub.f32 %v2059, %v2202
    %2204 = vmatmul.f32.gmra.mxu0 %v2203
    %v2205 = vpop.f32.mrf.mxu0
    %v2206 = vadd.f32 %v2164, %v2205
    %v2207 = vand.u32 %v2062, 4294901760
    %v2208 = vsub.f32 %v2062, %v2207
    %2209 = vmatmul.f32.gmra.mxu0 %v2208
    %v2210 = vpop.f32.mrf.mxu0
    %v2211 = vadd.f32 %v2168, %v2210
    %2212 = vdwg.mxu0
    %2213 = vmatpush.msra.mxu0 0.0
    %2214 = vmatpush.msra.mxu0 0.0
    %2215 = vmatpush.msra.mxu0 0.0
    %2216 = vmatpush.msra.mxu0 0.0
    %2217 = vmatpush.msra.mxu0 0.0
    %2218 = vmatpush.msra.mxu0 0.0
    %2219 = vmatpush.msra.mxu0 0.0
    %2220 = vmatpush.msra.mxu0 0.0
    %v2221 = vand.u32 %v1779, 4294901760
    %2222 = vmatpush.msra.mxu0 %v2221
    %v2223 = vand.u32 %v1778, 4294901760
    %2224 = vmatpush.msra.mxu0 %v2223
    %v2225 = vand.u32 %v1777, 4294901760
    %2226 = vmatpush.msra.mxu0 %v2225
    %v2227 = vand.u32 %v1776, 4294901760
    %2228 = vmatpush.msra.mxu0 %v2227
    %v2229 = vand.u32 %v1775, 4294901760
    %2230 = vmatpush.msra.mxu0 %v2229
    %v2231 = vand.u32 %v1774, 4294901760
    %2232 = vmatpush.msra.mxu0 %v2231
    %v2233 = vand.u32 %v1773, 4294901760
    %2234 = vmatpush.msra.mxu0 %v2233
    %v2235 = vand.u32 %v1772, 4294901760
    %2236 = vmatpush.msra.mxu0 %v2235
    %v2237 = vand.u32 %v2059, 4294901760
    %v2238 = vsub.f32 %v2059, %v2237
    %v2239 = vand.u32 %v2238, 4294901760
    %2240 = vmatmul.f32.gmra.mxu0 %v2239
    %v2241 = vpop.f32.mrf.mxu0
    %v2242 = vadd.f32 %v2206, %v2241
    %v2243 = vand.u32 %v2062, 4294901760
    %v2244 = vsub.f32 %v2062, %v2243
    %v2245 = vand.u32 %v2244, 4294901760
    %2246 = vmatmul.f32.gmra.mxu0 %v2245
    %v2247 = vpop.f32.mrf.mxu0
    %v2248 = vadd.f32 %v2211, %v2247
    %2249 = vdwg.mxu0
    %2250 = vmatpush.msra.mxu0 0.0
    %2251 = vmatpush.msra.mxu0 0.0
    %2252 = vmatpush.msra.mxu0 0.0
    %2253 = vmatpush.msra.mxu0 0.0
    %2254 = vmatpush.msra.mxu0 0.0
    %2255 = vmatpush.msra.mxu0 0.0
    %2256 = vmatpush.msra.mxu0 0.0
    %2257 = vmatpush.msra.mxu0 0.0
    %v2258 = vand.u32 %v1779, 4294901760
    %v2259 = vsub.f32 %v1779, %v2258
    %v2260 = vand.u32 %v2259, 4294901760
    %2261 = vmatpush.msra.mxu0 %v2260
    %v2262 = vand.u32 %v1778, 4294901760
    %v2263 = vsub.f32 %v1778, %v2262
    %v2264 = vand.u32 %v2263, 4294901760
    %2265 = vmatpush.msra.mxu0 %v2264
    %v2266 = vand.u32 %v1777, 4294901760
    %v2267 = vsub.f32 %v1777, %v2266
    %v2268 = vand.u32 %v2267, 4294901760
    %2269 = vmatpush.msra.mxu0 %v2268
    %v2270 = vand.u32 %v1776, 4294901760
    %v2271 = vsub.f32 %v1776, %v2270
    %v2272 = vand.u32 %v2271, 4294901760
    %2273 = vmatpush.msra.mxu0 %v2272
    %v2274 = vand.u32 %v1775, 4294901760
    %v2275 = vsub.f32 %v1775, %v2274
    %v2276 = vand.u32 %v2275, 4294901760
    %2277 = vmatpush.msra.mxu0 %v2276
    %v2278 = vand.u32 %v1774, 4294901760
    %v2279 = vsub.f32 %v1774, %v2278
    %v2280 = vand.u32 %v2279, 4294901760
    %2281 = vmatpush.msra.mxu0 %v2280
    %v2282 = vand.u32 %v1773, 4294901760
    %v2283 = vsub.f32 %v1773, %v2282
    %v2284 = vand.u32 %v2283, 4294901760
    %2285 = vmatpush.msra.mxu0 %v2284
    %v2286 = vand.u32 %v1772, 4294901760
    %v2287 = vsub.f32 %v1772, %v2286
    %v2288 = vand.u32 %v2287, 4294901760
    %2289 = vmatpush.msra.mxu0 %v2288
    %v2290 = vand.u32 %v2059, 4294901760
    %2291 = vmatmul.f32.gmra.mxu0 %v2290
    %v2292 = vpop.f32.mrf.mxu0
    %v2293 = vadd.f32 %v2242, %v2292
    %v2294 = vand.u32 %v2062, 4294901760
    %2295 = vmatmul.f32.gmra.mxu0 %v2294
    %v2296 = vpop.f32.mrf.mxu0
    %v2297 = vadd.f32 %v2248, %v2296
    %2298 = vdwg.mxu0
    %2299 = vmatpush.msra.mxu0 0.0
    %2300 = vmatpush.msra.mxu0 0.0
    %2301 = vmatpush.msra.mxu0 0.0
    %2302 = vmatpush.msra.mxu0 0.0
    %2303 = vmatpush.msra.mxu0 0.0
    %2304 = vmatpush.msra.mxu0 0.0
    %2305 = vmatpush.msra.mxu0 0.0
    %2306 = vmatpush.msra.mxu0 0.0
    %v2307 = vand.u32 %v1779, 4294901760
    %2308 = vmatpush.msra.mxu0 %v2307
    %v2309 = vand.u32 %v1778, 4294901760
    %2310 = vmatpush.msra.mxu0 %v2309
    %v2311 = vand.u32 %v1777, 4294901760
    %2312 = vmatpush.msra.mxu0 %v2311
    %v2313 = vand.u32 %v1776, 4294901760
    %2314 = vmatpush.msra.mxu0 %v2313
    %v2315 = vand.u32 %v1775, 4294901760
    %2316 = vmatpush.msra.mxu0 %v2315
    %v2317 = vand.u32 %v1774, 4294901760
    %2318 = vmatpush.msra.mxu0 %v2317
    %v2319 = vand.u32 %v1773, 4294901760
    %2320 = vmatpush.msra.mxu0 %v2319
    %v2321 = vand.u32 %v1772, 4294901760
    %2322 = vmatpush.msra.mxu0 %v2321
    %v2323 = vand.u32 %v2059, 4294901760
    %2324 = vmatmul.f32.gmra.mxu0 %v2323
    %v2325 = vpop.f32.mrf.mxu0
    %v2326 = vadd.f32 %v2293, %v2325
    %v2327 = vand.u32 %v2062, 4294901760
    %2328 = vmatmul.f32.gmra.mxu0 %v2327
    %v2329 = vpop.f32.mrf.mxu0
    %v2330 = vadd.f32 %v2297, %v2329
    %2331 = vdwg.mxu0
    %v2332 = vrsqrt.pop %v2326
    %v2333 = vmul.f32 %v2332, %v2326
    %v2334 = vmul.f32 %v2333, %v2332
    %v2335 = vmul.f32 0.5, %v2334
    %v2336 = vsub.f32 1.5, %v2335
    %v2337 = vmul.f32 %v2332, %v2336
    %vm2338 = vweird.f32 %v2326
    %vm2339 = vweird.f32 %v2332
    %vm2340 = vmor %vm2338, %vm2339
    %v2341 = vsel %vm2340, %v2332, %v2337
    %v2342 = vrsqrt.pop %v2330
    %v2343 = vmul.f32 %v2342, %v2330
    %v2344 = vmul.f32 %v2343, %v2342
    %v2345 = vmul.f32 0.5, %v2344
    %v2346 = vsub.f32 1.5, %v2345
    %v2347 = vmul.f32 %v2342, %v2346
    %vm2348 = vweird.f32 %v2330
    %vm2349 = vweird.f32 %v2342
    %vm2350 = vmor %vm2348, %vm2349
    %v2351 = vsel %vm2350, %v2342, %v2347
    %v2352 = vmul.f32 %v2054, %v2341
    %v2353 = vmul.f32 %v2055, %v2351
    %v2354 = vld [vmem:[%s8] sm:$0x1]
    %v2356 = vperm.slane %v2354, 0
    %v2358 = vmul.f32 %v2352, %v2356
    %v2359 = vmul.f32 %v2353, %v2356
    %v2360 = vld [vmem:[%s9] sm:$0x1]
    %v2362 = vperm.slane %v2360, 0
    %v2364 = vadd.f32 %v2358, %v2362
    %v2365 = vadd.f32 %v2359, %v2362
    %v2366 = vmul.f32 %v2364, %v128
    %v2367 = vmul.f32 %v2365, %v129
    %v2369 = vsel %vm649, %v2366, 0
    %v2372 = vsel %vm649, %v2367, 0
    %2374 = vmatpush.msra.mxu0 0.0
    %2375 = vmatpush.msra.mxu0 0.0
    %2376 = vmatpush.msra.mxu0 0.0
    %2377 = vmatpush.msra.mxu0 0.0
    %2378 = vmatpush.msra.mxu0 0.0
    %2379 = vmatpush.msra.mxu0 0.0
    %2380 = vmatpush.msra.mxu0 0.0
    %2381 = vmatpush.msra.mxu0 0.0
    %v2382 = vand.u32 %v624, 4294901760
    %2383 = vmatpush.msra.mxu0 %v2382
    %v2384 = vand.u32 %v623, 4294901760
    %2385 = vmatpush.msra.mxu0 %v2384
    %v2386 = vand.u32 %v622, 4294901760
    %2387 = vmatpush.msra.mxu0 %v2386
    %v2388 = vand.u32 %v621, 4294901760
    %2389 = vmatpush.msra.mxu0 %v2388
    %v2390 = vand.u32 %v620, 4294901760
    %2391 = vmatpush.msra.mxu0 %v2390
    %v2392 = vand.u32 %v619, 4294901760
    %2393 = vmatpush.msra.mxu0 %v2392
    %v2394 = vand.u32 %v618, 4294901760
    %2395 = vmatpush.msra.mxu0 %v2394
    %v2396 = vand.u32 %v617, 4294901760
    %2397 = vmatpush.msra.mxu0 %v2396
    %v2398 = vand.u32 %v2369, 4294901760
    %v2399 = vsub.f32 %v2369, %v2398
    %v2400 = vand.u32 %v2399, 4294901760
    %v2401 = vsub.f32 %v2399, %v2400
    %v2402 = vand.u32 %v2401, 4294901760
    %2403 = vmatmul.f32.gmra.mxu0 %v2402
    %v2404 = vpop.f32.mrf.mxu0
    %v2405 = vadd.f32 0.0, %v2404
    %v2406 = vand.u32 %v2372, 4294901760
    %v2407 = vsub.f32 %v2372, %v2406
    %v2408 = vand.u32 %v2407, 4294901760
    %v2409 = vsub.f32 %v2407, %v2408
    %v2410 = vand.u32 %v2409, 4294901760
    %2411 = vmatmul.f32.gmra.mxu0 %v2410
    %v2412 = vpop.f32.mrf.mxu0
    %v2413 = vadd.f32 0.0, %v2412
    %2414 = vdwg.mxu0
    %2415 = vmatpush.msra.mxu0 0.0
    %2416 = vmatpush.msra.mxu0 0.0
    %2417 = vmatpush.msra.mxu0 0.0
    %2418 = vmatpush.msra.mxu0 0.0
    %2419 = vmatpush.msra.mxu0 0.0
    %2420 = vmatpush.msra.mxu0 0.0
    %2421 = vmatpush.msra.mxu0 0.0
    %2422 = vmatpush.msra.mxu0 0.0
    %v2423 = vand.u32 %v624, 4294901760
    %v2424 = vsub.f32 %v624, %v2423
    %v2425 = vand.u32 %v2424, 4294901760
    %v2426 = vsub.f32 %v2424, %v2425
    %v2427 = vand.u32 %v2426, 4294901760
    %2428 = vmatpush.msra.mxu0 %v2427
    %v2429 = vand.u32 %v623, 4294901760
    %v2430 = vsub.f32 %v623, %v2429
    %v2431 = vand.u32 %v2430, 4294901760
    %v2432 = vsub.f32 %v2430, %v2431
    %v2433 = vand.u32 %v2432, 4294901760
    %2434 = vmatpush.msra.mxu0 %v2433
    %v2435 = vand.u32 %v622, 4294901760
    %v2436 = vsub.f32 %v622, %v2435
    %v2437 = vand.u32 %v2436, 4294901760
    %v2438 = vsub.f32 %v2436, %v2437
    %v2439 = vand.u32 %v2438, 4294901760
    %2440 = vmatpush.msra.mxu0 %v2439
    %v2441 = vand.u32 %v621, 4294901760
    %v2442 = vsub.f32 %v621, %v2441
    %v2443 = vand.u32 %v2442, 4294901760
    %v2444 = vsub.f32 %v2442, %v2443
    %v2445 = vand.u32 %v2444, 4294901760
    %2446 = vmatpush.msra.mxu0 %v2445
    %v2447 = vand.u32 %v620, 4294901760
    %v2448 = vsub.f32 %v620, %v2447
    %v2449 = vand.u32 %v2448, 4294901760
    %v2450 = vsub.f32 %v2448, %v2449
    %v2451 = vand.u32 %v2450, 4294901760
    %2452 = vmatpush.msra.mxu0 %v2451
    %v2453 = vand.u32 %v619, 4294901760
    %v2454 = vsub.f32 %v619, %v2453
    %v2455 = vand.u32 %v2454, 4294901760
    %v2456 = vsub.f32 %v2454, %v2455
    %v2457 = vand.u32 %v2456, 4294901760
    %2458 = vmatpush.msra.mxu0 %v2457
    %v2459 = vand.u32 %v618, 4294901760
    %v2460 = vsub.f32 %v618, %v2459
    %v2461 = vand.u32 %v2460, 4294901760
    %v2462 = vsub.f32 %v2460, %v2461
    %v2463 = vand.u32 %v2462, 4294901760
    %2464 = vmatpush.msra.mxu0 %v2463
    %v2465 = vand.u32 %v617, 4294901760
    %v2466 = vsub.f32 %v617, %v2465
    %v2467 = vand.u32 %v2466, 4294901760
    %v2468 = vsub.f32 %v2466, %v2467
    %v2469 = vand.u32 %v2468, 4294901760
    %2470 = vmatpush.msra.mxu0 %v2469
    %v2471 = vand.u32 %v2369, 4294901760
    %2472 = vmatmul.f32.gmra.mxu0 %v2471
    %v2473 = vpop.f32.mrf.mxu0
    %v2474 = vadd.f32 %v2405, %v2473
    %v2475 = vand.u32 %v2372, 4294901760
    %2476 = vmatmul.f32.gmra.mxu0 %v2475
    %v2477 = vpop.f32.mrf.mxu0
    %v2478 = vadd.f32 %v2413, %v2477
    %2479 = vdwg.mxu0
    %2480 = vmatpush.msra.mxu0 0.0
    %2481 = vmatpush.msra.mxu0 0.0
    %2482 = vmatpush.msra.mxu0 0.0
    %2483 = vmatpush.msra.mxu0 0.0
    %2484 = vmatpush.msra.mxu0 0.0
    %2485 = vmatpush.msra.mxu0 0.0
    %2486 = vmatpush.msra.mxu0 0.0
    %2487 = vmatpush.msra.mxu0 0.0
    %v2488 = vand.u32 %v624, 4294901760
    %v2489 = vsub.f32 %v624, %v2488
    %2490 = vmatpush.msra.mxu0 %v2489
    %v2491 = vand.u32 %v623, 4294901760
    %v2492 = vsub.f32 %v623, %v2491
    %2493 = vmatpush.msra.mxu0 %v2492
    %v2494 = vand.u32 %v622, 4294901760
    %v2495 = vsub.f32 %v622, %v2494
    %2496 = vmatpush.msra.mxu0 %v2495
    %v2497 = vand.u32 %v621, 4294901760
    %v2498 = vsub.f32 %v621, %v2497
    %2499 = vmatpush.msra.mxu0 %v2498
    %v2500 = vand.u32 %v620, 4294901760
    %v2501 = vsub.f32 %v620, %v2500
    %2502 = vmatpush.msra.mxu0 %v2501
    %v2503 = vand.u32 %v619, 4294901760
    %v2504 = vsub.f32 %v619, %v2503
    %2505 = vmatpush.msra.mxu0 %v2504
    %v2506 = vand.u32 %v618, 4294901760
    %v2507 = vsub.f32 %v618, %v2506
    %2508 = vmatpush.msra.mxu0 %v2507
    %v2509 = vand.u32 %v617, 4294901760
    %v2510 = vsub.f32 %v617, %v2509
    %2511 = vmatpush.msra.mxu0 %v2510
    %v2512 = vand.u32 %v2369, 4294901760
    %v2513 = vsub.f32 %v2369, %v2512
    %2514 = vmatmul.f32.gmra.mxu0 %v2513
    %v2515 = vpop.f32.mrf.mxu0
    %v2516 = vadd.f32 %v2474, %v2515
    %v2517 = vand.u32 %v2372, 4294901760
    %v2518 = vsub.f32 %v2372, %v2517
    %2519 = vmatmul.f32.gmra.mxu0 %v2518
    %v2520 = vpop.f32.mrf.mxu0
    %v2521 = vadd.f32 %v2478, %v2520
    %2522 = vdwg.mxu0
    %2523 = vmatpush.msra.mxu0 0.0
    %2524 = vmatpush.msra.mxu0 0.0
    %2525 = vmatpush.msra.mxu0 0.0
    %2526 = vmatpush.msra.mxu0 0.0
    %2527 = vmatpush.msra.mxu0 0.0
    %2528 = vmatpush.msra.mxu0 0.0
    %2529 = vmatpush.msra.mxu0 0.0
    %2530 = vmatpush.msra.mxu0 0.0
    %v2531 = vand.u32 %v624, 4294901760
    %2532 = vmatpush.msra.mxu0 %v2531
    %v2533 = vand.u32 %v623, 4294901760
    %2534 = vmatpush.msra.mxu0 %v2533
    %v2535 = vand.u32 %v622, 4294901760
    %2536 = vmatpush.msra.mxu0 %v2535
    %v2537 = vand.u32 %v621, 4294901760
    %2538 = vmatpush.msra.mxu0 %v2537
    %v2539 = vand.u32 %v620, 4294901760
    %2540 = vmatpush.msra.mxu0 %v2539
    %v2541 = vand.u32 %v619, 4294901760
    %2542 = vmatpush.msra.mxu0 %v2541
    %v2543 = vand.u32 %v618, 4294901760
    %2544 = vmatpush.msra.mxu0 %v2543
    %v2545 = vand.u32 %v617, 4294901760
    %2546 = vmatpush.msra.mxu0 %v2545
    %v2547 = vand.u32 %v2369, 4294901760
    %v2548 = vsub.f32 %v2369, %v2547
    %v2549 = vand.u32 %v2548, 4294901760
    %2550 = vmatmul.f32.gmra.mxu0 %v2549
    %v2551 = vpop.f32.mrf.mxu0
    %v2552 = vadd.f32 %v2516, %v2551
    %v2553 = vand.u32 %v2372, 4294901760
    %v2554 = vsub.f32 %v2372, %v2553
    %v2555 = vand.u32 %v2554, 4294901760
    %2556 = vmatmul.f32.gmra.mxu0 %v2555
    %v2557 = vpop.f32.mrf.mxu0
    %v2558 = vadd.f32 %v2521, %v2557
    %2559 = vdwg.mxu0
    %2560 = vmatpush.msra.mxu0 0.0
    %2561 = vmatpush.msra.mxu0 0.0
    %2562 = vmatpush.msra.mxu0 0.0
    %2563 = vmatpush.msra.mxu0 0.0
    %2564 = vmatpush.msra.mxu0 0.0
    %2565 = vmatpush.msra.mxu0 0.0
    %2566 = vmatpush.msra.mxu0 0.0
    %2567 = vmatpush.msra.mxu0 0.0
    %v2568 = vand.u32 %v624, 4294901760
    %v2569 = vsub.f32 %v624, %v2568
    %v2570 = vand.u32 %v2569, 4294901760
    %2571 = vmatpush.msra.mxu0 %v2570
    %v2572 = vand.u32 %v623, 4294901760
    %v2573 = vsub.f32 %v623, %v2572
    %v2574 = vand.u32 %v2573, 4294901760
    %2575 = vmatpush.msra.mxu0 %v2574
    %v2576 = vand.u32 %v622, 4294901760
    %v2577 = vsub.f32 %v622, %v2576
    %v2578 = vand.u32 %v2577, 4294901760
    %2579 = vmatpush.msra.mxu0 %v2578
    %v2580 = vand.u32 %v621, 4294901760
    %v2581 = vsub.f32 %v621, %v2580
    %v2582 = vand.u32 %v2581, 4294901760
    %2583 = vmatpush.msra.mxu0 %v2582
    %v2584 = vand.u32 %v620, 4294901760
    %v2585 = vsub.f32 %v620, %v2584
    %v2586 = vand.u32 %v2585, 4294901760
    %2587 = vmatpush.msra.mxu0 %v2586
    %v2588 = vand.u32 %v619, 4294901760
    %v2589 = vsub.f32 %v619, %v2588
    %v2590 = vand.u32 %v2589, 4294901760
    %2591 = vmatpush.msra.mxu0 %v2590
    %v2592 = vand.u32 %v618, 4294901760
    %v2593 = vsub.f32 %v618, %v2592
    %v2594 = vand.u32 %v2593, 4294901760
    %2595 = vmatpush.msra.mxu0 %v2594
    %v2596 = vand.u32 %v617, 4294901760
    %v2597 = vsub.f32 %v617, %v2596
    %v2598 = vand.u32 %v2597, 4294901760
    %2599 = vmatpush.msra.mxu0 %v2598
    %v2600 = vand.u32 %v2369, 4294901760
    %2601 = vmatmul.f32.gmra.mxu0 %v2600
    %v2602 = vpop.f32.mrf.mxu0
    %v2603 = vadd.f32 %v2552, %v2602
    %v2604 = vand.u32 %v2372, 4294901760
    %2605 = vmatmul.f32.gmra.mxu0 %v2604
    %v2606 = vpop.f32.mrf.mxu0
    %v2607 = vadd.f32 %v2558, %v2606
    %2608 = vdwg.mxu0
    %2609 = vmatpush.msra.mxu0 0.0
    %2610 = vmatpush.msra.mxu0 0.0
    %2611 = vmatpush.msra.mxu0 0.0
    %2612 = vmatpush.msra.mxu0 0.0
    %2613 = vmatpush.msra.mxu0 0.0
    %2614 = vmatpush.msra.mxu0 0.0
    %2615 = vmatpush.msra.mxu0 0.0
    %2616 = vmatpush.msra.mxu0 0.0
    %v2617 = vand.u32 %v624, 4294901760
    %2618 = vmatpush.msra.mxu0 %v2617
    %v2619 = vand.u32 %v623, 4294901760
    %2620 = vmatpush.msra.mxu0 %v2619
    %v2621 = vand.u32 %v622, 4294901760
    %2622 = vmatpush.msra.mxu0 %v2621
    %v2623 = vand.u32 %v621, 4294901760
    %2624 = vmatpush.msra.mxu0 %v2623
    %v2625 = vand.u32 %v620, 4294901760
    %2626 = vmatpush.msra.mxu0 %v2625
    %v2627 = vand.u32 %v619, 4294901760
    %2628 = vmatpush.msra.mxu0 %v2627
    %v2629 = vand.u32 %v618, 4294901760
    %2630 = vmatpush.msra.mxu0 %v2629
    %v2631 = vand.u32 %v617, 4294901760
    %2632 = vmatpush.msra.mxu0 %v2631
    %v2633 = vand.u32 %v2369, 4294901760
    %2634 = vmatmul.f32.gmra.mxu0 %v2633
    %v2635 = vpop.f32.mrf.mxu0
    %v2636 = vadd.f32 %v2603, %v2635
    %v2637 = vand.u32 %v2372, 4294901760
    %2638 = vmatmul.f32.gmra.mxu0 %v2637
    %v2639 = vpop.f32.mrf.mxu0
    %v2640 = vadd.f32 %v2607, %v2639
    %2641 = vdwg.mxu0
    %v2642 = vld [vmem:[%s10] sm:$0xff]
    %v2643 = vld [vmem:[%s10 + $0x8] sm:$0xff]
    %v2644 = vld [vmem:[%s10 + $0x10] sm:$0xff]
    %v2645 = vld [vmem:[%s10 + $0x18] sm:$0xff]
    %v2646 = vld [vmem:[%s10 + $0x20] sm:$0xff]
    %v2647 = vld [vmem:[%s10 + $0x28] sm:$0xff]
    %v2648 = vld [vmem:[%s10 + $0x30] sm:$0xff]
    %v2649 = vld [vmem:[%s10 + $0x38] sm:$0xff]
    %v2650 = vld [vmem:[%s11] sm:$0x1]
    %v2652 = vperm.slane %v2650, 0
    %v2655 = vsel %vm649, %v2636, 0
    %v2658 = vsel %vm649, %v2640, 0
    %2660 = vmatpush.msra.mxu0 0.0
    %2661 = vmatpush.msra.mxu0 0.0
    %2662 = vmatpush.msra.mxu0 0.0
    %2663 = vmatpush.msra.mxu0 0.0
    %2664 = vmatpush.msra.mxu0 0.0
    %2665 = vmatpush.msra.mxu0 0.0
    %2666 = vmatpush.msra.mxu0 0.0
    %2667 = vmatpush.msra.mxu0 0.0
    %v2668 = vand.u32 %v2649, 4294901760
    %2669 = vmatpush.msra.mxu0 %v2668
    %v2670 = vand.u32 %v2648, 4294901760
    %2671 = vmatpush.msra.mxu0 %v2670
    %v2672 = vand.u32 %v2647, 4294901760
    %2673 = vmatpush.msra.mxu0 %v2672
    %v2674 = vand.u32 %v2646, 4294901760
    %2675 = vmatpush.msra.mxu0 %v2674
    %v2676 = vand.u32 %v2645, 4294901760
    %2677 = vmatpush.msra.mxu0 %v2676
    %v2678 = vand.u32 %v2644, 4294901760
    %2679 = vmatpush.msra.mxu0 %v2678
    %v2680 = vand.u32 %v2643, 4294901760
    %2681 = vmatpush.msra.mxu0 %v2680
    %v2682 = vand.u32 %v2642, 4294901760
    %2683 = vmatpush.msra.mxu0 %v2682
    %v2684 = vand.u32 %v2655, 4294901760
    %v2685 = vsub.f32 %v2655, %v2684
    %v2686 = vand.u32 %v2685, 4294901760
    %v2687 = vsub.f32 %v2685, %v2686
    %v2688 = vand.u32 %v2687, 4294901760
    %2689 = vmatmul.f32.gmra.mxu0 %v2688
    %v2690 = vpop.f32.mrf.mxu0
    %v2691 = vadd.f32 %v2652, %v2690
    %v2692 = vand.u32 %v2658, 4294901760
    %v2693 = vsub.f32 %v2658, %v2692
    %v2694 = vand.u32 %v2693, 4294901760
    %v2695 = vsub.f32 %v2693, %v2694
    %v2696 = vand.u32 %v2695, 4294901760
    %2697 = vmatmul.f32.gmra.mxu0 %v2696
    %v2698 = vpop.f32.mrf.mxu0
    %v2699 = vadd.f32 %v2652, %v2698
    %2700 = vdwg.mxu0
    %2701 = vmatpush.msra.mxu0 0.0
    %2702 = vmatpush.msra.mxu0 0.0
    %2703 = vmatpush.msra.mxu0 0.0
    %2704 = vmatpush.msra.mxu0 0.0
    %2705 = vmatpush.msra.mxu0 0.0
    %2706 = vmatpush.msra.mxu0 0.0
    %2707 = vmatpush.msra.mxu0 0.0
    %2708 = vmatpush.msra.mxu0 0.0
    %v2709 = vand.u32 %v2649, 4294901760
    %v2710 = vsub.f32 %v2649, %v2709
    %v2711 = vand.u32 %v2710, 4294901760
    %v2712 = vsub.f32 %v2710, %v2711
    %v2713 = vand.u32 %v2712, 4294901760
    %2714 = vmatpush.msra.mxu0 %v2713
    %v2715 = vand.u32 %v2648, 4294901760
    %v2716 = vsub.f32 %v2648, %v2715
    %v2717 = vand.u32 %v2716, 4294901760
    %v2718 = vsub.f32 %v2716, %v2717
    %v2719 = vand.u32 %v2718, 4294901760
    %2720 = vmatpush.msra.mxu0 %v2719
    %v2721 = vand.u32 %v2647, 4294901760
    %v2722 = vsub.f32 %v2647, %v2721
    %v2723 = vand.u32 %v2722, 4294901760
    %v2724 = vsub.f32 %v2722, %v2723
    %v2725 = vand.u32 %v2724, 4294901760
    %2726 = vmatpush.msra.mxu0 %v2725
    %v2727 = vand.u32 %v2646, 4294901760
    %v2728 = vsub.f32 %v2646, %v2727
    %v2729 = vand.u32 %v2728, 4294901760
    %v2730 = vsub.f32 %v2728, %v2729
    %v2731 = vand.u32 %v2730, 4294901760
    %2732 = vmatpush.msra.mxu0 %v2731
    %v2733 = vand.u32 %v2645, 4294901760
    %v2734 = vsub.f32 %v2645, %v2733
    %v2735 = vand.u32 %v2734, 4294901760
    %v2736 = vsub.f32 %v2734, %v2735
    %v2737 = vand.u32 %v2736, 4294901760
    %2738 = vmatpush.msra.mxu0 %v2737
    %v2739 = vand.u32 %v2644, 4294901760
    %v2740 = vsub.f32 %v2644, %v2739
    %v2741 = vand.u32 %v2740, 4294901760
    %v2742 = vsub.f32 %v2740, %v2741
    %v2743 = vand.u32 %v2742, 4294901760
    %2744 = vmatpush.msra.mxu0 %v2743
    %v2745 = vand.u32 %v2643, 4294901760
    %v2746 = vsub.f32 %v2643, %v2745
    %v2747 = vand.u32 %v2746, 4294901760
    %v2748 = vsub.f32 %v2746, %v2747
    %v2749 = vand.u32 %v2748, 4294901760
    %2750 = vmatpush.msra.mxu0 %v2749
    %v2751 = vand.u32 %v2642, 4294901760
    %v2752 = vsub.f32 %v2642, %v2751
    %v2753 = vand.u32 %v2752, 4294901760
    %v2754 = vsub.f32 %v2752, %v2753
    %v2755 = vand.u32 %v2754, 4294901760
    %2756 = vmatpush.msra.mxu0 %v2755
    %v2757 = vand.u32 %v2655, 4294901760
    %2758 = vmatmul.f32.gmra.mxu0 %v2757
    %v2759 = vpop.f32.mrf.mxu0
    %v2760 = vadd.f32 %v2691, %v2759
    %v2761 = vand.u32 %v2658, 4294901760
    %2762 = vmatmul.f32.gmra.mxu0 %v2761
    %v2763 = vpop.f32.mrf.mxu0
    %v2764 = vadd.f32 %v2699, %v2763
    %2765 = vdwg.mxu0
    %2766 = vmatpush.msra.mxu0 0.0
    %2767 = vmatpush.msra.mxu0 0.0
    %2768 = vmatpush.msra.mxu0 0.0
    %2769 = vmatpush.msra.mxu0 0.0
    %2770 = vmatpush.msra.mxu0 0.0
    %2771 = vmatpush.msra.mxu0 0.0
    %2772 = vmatpush.msra.mxu0 0.0
    %2773 = vmatpush.msra.mxu0 0.0
    %v2774 = vand.u32 %v2649, 4294901760
    %v2775 = vsub.f32 %v2649, %v2774
    %2776 = vmatpush.msra.mxu0 %v2775
    %v2777 = vand.u32 %v2648, 4294901760
    %v2778 = vsub.f32 %v2648, %v2777
    %2779 = vmatpush.msra.mxu0 %v2778
    %v2780 = vand.u32 %v2647, 4294901760
    %v2781 = vsub.f32 %v2647, %v2780
    %2782 = vmatpush.msra.mxu0 %v2781
    %v2783 = vand.u32 %v2646, 4294901760
    %v2784 = vsub.f32 %v2646, %v2783
    %2785 = vmatpush.msra.mxu0 %v2784
    %v2786 = vand.u32 %v2645, 4294901760
    %v2787 = vsub.f32 %v2645, %v2786
    %2788 = vmatpush.msra.mxu0 %v2787
    %v2789 = vand.u32 %v2644, 4294901760
    %v2790 = vsub.f32 %v2644, %v2789
    %2791 = vmatpush.msra.mxu0 %v2790
    %v2792 = vand.u32 %v2643, 4294901760
    %v2793 = vsub.f32 %v2643, %v2792
    %2794 = vmatpush.msra.mxu0 %v2793
    %v2795 = vand.u32 %v2642, 4294901760
    %v2796 = vsub.f32 %v2642, %v2795
    %2797 = vmatpush.msra.mxu0 %v2796
    %v2798 = vand.u32 %v2655, 4294901760
    %v2799 = vsub.f32 %v2655, %v2798
    %2800 = vmatmul.f32.gmra.mxu0 %v2799
    %v2801 = vpop.f32.mrf.mxu0
    %v2802 = vadd.f32 %v2760, %v2801
    %v2803 = vand.u32 %v2658, 4294901760
    %v2804 = vsub.f32 %v2658, %v2803
    %2805 = vmatmul.f32.gmra.mxu0 %v2804
    %v2806 = vpop.f32.mrf.mxu0
    %v2807 = vadd.f32 %v2764, %v2806
    %2808 = vdwg.mxu0
    %2809 = vmatpush.msra.mxu0 0.0
    %2810 = vmatpush.msra.mxu0 0.0
    %2811 = vmatpush.msra.mxu0 0.0
    %2812 = vmatpush.msra.mxu0 0.0
    %2813 = vmatpush.msra.mxu0 0.0
    %2814 = vmatpush.msra.mxu0 0.0
    %2815 = vmatpush.msra.mxu0 0.0
    %2816 = vmatpush.msra.mxu0 0.0
    %v2817 = vand.u32 %v2649, 4294901760
    %2818 = vmatpush.msra.mxu0 %v2817
    %v2819 = vand.u32 %v2648, 4294901760
    %2820 = vmatpush.msra.mxu0 %v2819
    %v2821 = vand.u32 %v2647, 4294901760
    %2822 = vmatpush.msra.mxu0 %v2821
    %v2823 = vand.u32 %v2646, 4294901760
    %2824 = vmatpush.msra.mxu0 %v2823
    %v2825 = vand.u32 %v2645, 4294901760
    %2826 = vmatpush.msra.mxu0 %v2825
    %v2827 = vand.u32 %v2644, 4294901760
    %2828 = vmatpush.msra.mxu0 %v2827
    %v2829 = vand.u32 %v2643, 4294901760
    %2830 = vmatpush.msra.mxu0 %v2829
    %v2831 = vand.u32 %v2642, 4294901760
    %2832 = vmatpush.msra.mxu0 %v2831
    %v2833 = vand.u32 %v2655, 4294901760
    %v2834 = vsub.f32 %v2655, %v2833
    %v2835 = vand.u32 %v2834, 4294901760
    %2836 = vmatmul.f32.gmra.mxu0 %v2835
    %v2837 = vpop.f32.mrf.mxu0
    %v2838 = vadd.f32 %v2802, %v2837
    %v2839 = vand.u32 %v2658, 4294901760
    %v2840 = vsub.f32 %v2658, %v2839
    %v2841 = vand.u32 %v2840, 4294901760
    %2842 = vmatmul.f32.gmra.mxu0 %v2841
    %v2843 = vpop.f32.mrf.mxu0
    %v2844 = vadd.f32 %v2807, %v2843
    %2845 = vdwg.mxu0
    %2846 = vmatpush.msra.mxu0 0.0
    %2847 = vmatpush.msra.mxu0 0.0
    %2848 = vmatpush.msra.mxu0 0.0
    %2849 = vmatpush.msra.mxu0 0.0
    %2850 = vmatpush.msra.mxu0 0.0
    %2851 = vmatpush.msra.mxu0 0.0
    %2852 = vmatpush.msra.mxu0 0.0
    %2853 = vmatpush.msra.mxu0 0.0
    %v2854 = vand.u32 %v2649, 4294901760
    %v2855 = vsub.f32 %v2649, %v2854
    %v2856 = vand.u32 %v2855, 4294901760
    %2857 = vmatpush.msra.mxu0 %v2856
    %v2858 = vand.u32 %v2648, 4294901760
    %v2859 = vsub.f32 %v2648, %v2858
    %v2860 = vand.u32 %v2859, 4294901760
    %2861 = vmatpush.msra.mxu0 %v2860
    %v2862 = vand.u32 %v2647, 4294901760
    %v2863 = vsub.f32 %v2647, %v2862
    %v2864 = vand.u32 %v2863, 4294901760
    %2865 = vmatpush.msra.mxu0 %v2864
    %v2866 = vand.u32 %v2646, 4294901760
    %v2867 = vsub.f32 %v2646, %v2866
    %v2868 = vand.u32 %v2867, 4294901760
    %2869 = vmatpush.msra.mxu0 %v2868
    %v2870 = vand.u32 %v2645, 4294901760
    %v2871 = vsub.f32 %v2645, %v2870
    %v2872 = vand.u32 %v2871, 4294901760
    %2873 = vmatpush.msra.mxu0 %v2872
    %v2874 = vand.u32 %v2644, 4294901760
    %v2875 = vsub.f32 %v2644, %v2874
    %v2876 = vand.u32 %v2875, 4294901760
    %2877 = vmatpush.msra.mxu0 %v2876
    %v2878 = vand.u32 %v2643, 4294901760
    %v2879 = vsub.f32 %v2643, %v2878
    %v2880 = vand.u32 %v2879, 4294901760
    %2881 = vmatpush.msra.mxu0 %v2880
    %v2882 = vand.u32 %v2642, 4294901760
    %v2883 = vsub.f32 %v2642, %v2882
    %v2884 = vand.u32 %v2883, 4294901760
    %2885 = vmatpush.msra.mxu0 %v2884
    %v2886 = vand.u32 %v2655, 4294901760
    %2887 = vmatmul.f32.gmra.mxu0 %v2886
    %v2888 = vpop.f32.mrf.mxu0
    %v2889 = vadd.f32 %v2838, %v2888
    %v2890 = vand.u32 %v2658, 4294901760
    %2891 = vmatmul.f32.gmra.mxu0 %v2890
    %v2892 = vpop.f32.mrf.mxu0
    %v2893 = vadd.f32 %v2844, %v2892
    %2894 = vdwg.mxu0
    %2895 = vmatpush.msra.mxu0 0.0
    %2896 = vmatpush.msra.mxu0 0.0
    %2897 = vmatpush.msra.mxu0 0.0
    %2898 = vmatpush.msra.mxu0 0.0
    %2899 = vmatpush.msra.mxu0 0.0
    %2900 = vmatpush.msra.mxu0 0.0
    %2901 = vmatpush.msra.mxu0 0.0
    %2902 = vmatpush.msra.mxu0 0.0
    %v2903 = vand.u32 %v2649, 4294901760
    %2904 = vmatpush.msra.mxu0 %v2903
    %v2905 = vand.u32 %v2648, 4294901760
    %2906 = vmatpush.msra.mxu0 %v2905
    %v2907 = vand.u32 %v2647, 4294901760
    %2908 = vmatpush.msra.mxu0 %v2907
    %v2909 = vand.u32 %v2646, 4294901760
    %2910 = vmatpush.msra.mxu0 %v2909
    %v2911 = vand.u32 %v2645, 4294901760
    %2912 = vmatpush.msra.mxu0 %v2911
    %v2913 = vand.u32 %v2644, 4294901760
    %2914 = vmatpush.msra.mxu0 %v2913
    %v2915 = vand.u32 %v2643, 4294901760
    %2916 = vmatpush.msra.mxu0 %v2915
    %v2917 = vand.u32 %v2642, 4294901760
    %2918 = vmatpush.msra.mxu0 %v2917
    %v2919 = vand.u32 %v2655, 4294901760
    %2920 = vmatmul.f32.gmra.mxu0 %v2919
    %v2921 = vpop.f32.mrf.mxu0
    %v2922 = vadd.f32 %v2889, %v2921
    %v2923 = vand.u32 %v2658, 4294901760
    %2924 = vmatmul.f32.gmra.mxu0 %v2923
    %v2925 = vpop.f32.mrf.mxu0
    %v2926 = vadd.f32 %v2893, %v2925
    %2927 = vdwg.mxu0
    %2928 = vst.msk [vmem:[#allocation11] sm:$0xff] %vm138, %v2922
    %2929 = vst.msk [vmem:[#allocation11 + $0x8] sm:$0xff] %vm138, %v2926
    // Predicated region
    $region70: #{tpu_custom_call.1} parent=1 // pred_check
      _
    $region71: #{tpu_custom_call.1} parent=1 // pred_check_branch
      %2931 = sbr.rel (0) target = $region73
    $region72: #{tpu_custom_call.1} parent=1 // pred_region
      %2933 = vsyncadd [#allocation4], 0
      %s2934 = sshll.u32 [#allocation11], 4
      %s2935 = int_to_ptr.vmem [resolvable:$true] %s2934
      %s2936 = sshll.u32 %s12, 4
      %s2937 = int_to_ptr.hbm [resolvable:$true] %s2936
      %2942 = dma.vmem_to_hbm [thread:$0]  %s2935, 256, %s2937, [#allocation4], 128, 128, 8
    $region73: #{tpu_custom_call.1} parent=1 // pred_fallthru
      _
    // Predicated region
    $region74: #{tpu_custom_call.1} parent=1 // pred_check
      _
    $region75: #{tpu_custom_call.1} parent=1 // pred_check_branch
      %2944 = sbr.rel (0) target = $region77
    $region76: #{tpu_custom_call.1} parent=1 // pred_region
      %2946 = dma.done [#allocation4], 256
    $region77: #{tpu_custom_call.1} parent=1 // pred_fallthru
      _
    %2947 = vsyncpa [#allocation3], 1
    %2948 = vsyncpa [#allocation6], 1
    %2949 = vsyncpa [#allocation9], 1
    %2950 = vsyncpa [#allocation4], 1

</llo_original>
